<compile_context>
chip_gen: v6e
topology: v6e:2x2x1
jax: 0.10.0
libtpu: 0.0.40
codegen_flags: <defaults>
</compile_context>

<pallas_src>
import jax
import jax.numpy as jnp
from jax.experimental import pallas as pl
from jax.experimental.pallas import tpu as pltpu


def _make_kernel(offsets, shift, n_out, bt):
    """Builds the per-grid-step kernel (closure over static geometry)."""

    def kernel(x_ref, mask_ref, wc_ref, bc_ref, w1_ref, b1_ref,
               w2_ref, b2_ref, ws_ref, bs_ref, o_ref):
        # x_ref   : (Bt, Cin, n_ext)        bf16 zero-padded, shift-extended slab
        # mask_ref: (Bt*n_out, Bt)          f32 block-diag valid-mask / (H*W)
        # wc_ref  : (Cout, 9*Cin)           bf16 conv weight, tap-major columns
        # bc_ref  : (Cout, 1)               f32
        # w1_ref  : (Cred, Cout)  b1_ref: (Cred, 1)
        # w2_ref  : (Cout, Cred)  b2_ref: (Cout, 1)
        # ws_ref  : (1, Cout)     bs_ref: (1, 1)
        # o_ref   : (Bt, Cout, n_out)       f32, lane-dense (n_out % 128 == 0)

        # --- Build the stacked (9*Cin, Bt*n_out) RHS straight from the ref ---
        taps = []
        for off in offsets:
            s = shift + off                                   # static start
            if bt == 1:
                taps.append(x_ref[0, :, s:s + n_out])         # (Cin, n_out)
            else:
                taps.append(jnp.concatenate(
                    [x_ref[bi, :, s:s + n_out] for bi in range(bt)],
                    axis=1))                                  # (Cin, Bt*n_out)
        stacked = jnp.concatenate(taps, axis=0)               # (9*Cin, Bt*n_out)

        # --- Conv2d(3x3, pad=1) as ONE deep-K MXU dot, f32 accumulate ---
        conv = jnp.dot(wc_ref[...], stacked,
                       preferred_element_type=jnp.float32)    # (Cout, Bt*n_out)
        h = jnp.maximum(conv + bc_ref[...], 0.0)              # f32, >= 0

        # --- Channel SE: masked global mean on the MXU -> fc1 -> fc2 ---
        sq = jnp.dot(h, mask_ref[...],
                     preferred_element_type=jnp.float32)      # (Cout, Bt)
        z1 = jnp.maximum(
            jnp.dot(w1_ref[...], sq, preferred_element_type=jnp.float32)
            + b1_ref[...], 0.0)                               # (Cred, Bt)
        z2 = jax.nn.sigmoid(
            jnp.dot(w2_ref[...], z1, preferred_element_type=jnp.float32)
            + b2_ref[...])                                    # (Cout, Bt)

        # --- Spatial SE: 1x1 conv over channels -> sigmoid ---
        smap = jax.nn.sigmoid(
            jnp.dot(ws_ref[...], h, preferred_element_type=jnp.float32)
            + bs_ref[...])                                    # (1, Bt*n_out)

        # --- Fused scSE: max(h*z2, h*smap) == h * max(z2, smap) since h >= 0 ---
        for bi in range(bt):
            lo = bi * n_out
            hb = h[:, lo:lo + n_out]                          # (Cout, n_out)
            gate = jnp.maximum(z2[:, bi:bi + 1], smap[:, lo:lo + n_out])
            o_ref[bi] = (hb * gate).astype(o_ref.dtype)

    return kernel


def attention_block(x_nchw, params, *, batch_tile=None):
    """x_nchw: (B, Cin, H, W) float32. Returns (B, Cout, H, W) float32."""
    B, Cin, H, W = x_nchw.shape
    Cout = params["wconv"].shape[0]
    Cred = params["fc1_w"].shape[0]

    if batch_tile is None:
        # Amortize per-step overhead over batch, but keep >=2 grid steps so
        # v7x's two TensorCores both get work.
        batch_tile = 2 if (B % 2 == 0 and B >= 4) else 1
    bt = batch_tile
    assert B % bt == 0, "batch must be divisible by batch_tile"

    Hp, Wp = H + 2, W + 2
    n_full = Hp * Wp                           # flattened padded spatial size
    shift = Wp + 1                             # max |tap offset|
    n_out = ((n_full + 127) // 128) * 128      # lane-dense output width
    n_ext = ((n_out + 2 * shift + 127) // 128) * 128   # extended slab width

    # ---- plain-JAX glue: zero-pad spatially, flatten, extend for shifts ----
    xp = jnp.pad(x_nchw, ((0, 0), (0, 0), (1, 1), (1, 1)))    # (B,Cin,Hp,Wp)
    xf = xp.reshape(B, Cin, n_full)
    x_ext = jnp.pad(xf, ((0, 0), (0, 0), (shift, n_ext - n_full - shift)))
    x_ext = x_ext.astype(jnp.bfloat16)         # halve DMA bytes; f32 accumulate

    # masked-mean operand: block-diagonal over the Bt folded batch elements,
    # pre-scaled by 1/(H*W) (valid = interior, non-frame, non-tail positions)
    f = jnp.arange(n_out)
    r, c = f // Wp, f % Wp
    valid = (f < n_full) & (r >= 1) & (r <= H) & (c >= 1) & (c <= W)
    mcol = valid.astype(jnp.float32) * (1.0 / float(H * W))       # (n_out,)
    mask = jnp.kron(jnp.eye(bt, dtype=jnp.float32), mcol[:, None])  # (bt*n_out, bt)

    # conv weight as one (Cout, 9*Cin) deep-K matrix, tap-major (dh, dw) order
    wflat = jnp.transpose(params["wconv"], (0, 2, 3, 1)).reshape(Cout, 9 * Cin)
    wflat = wflat.astype(jnp.bfloat16)
    bc = params["bconv"].reshape(Cout, 1)
    w1 = params["fc1_w"]                     # (Cred, Cout)
    b1 = params["fc1_b"].reshape(Cred, 1)
    w2 = params["fc2_w"]                     # (Cout, Cred)
    b2 = params["fc2_b"].reshape(Cout, 1)
    ws = params["ws_w"].reshape(1, Cout)
    bs = params["ws_b"].reshape(1, 1)

    offsets = tuple((dh - 1) * Wp + (dw - 1)
                    for dh in range(3) for dw in range(3))
    kernel = _make_kernel(offsets, shift, n_out, bt)

    out = pl.pallas_call(
        kernel,
        out_shape=jax.ShapeDtypeStruct((B, Cout, n_out), jnp.float32),
        grid_spec=pltpu.PrefetchScalarGridSpec(
            num_scalar_prefetch=0,
            grid=(B // bt,),
            in_specs=[
                pl.BlockSpec((bt, Cin, n_ext), lambda g: (g, 0, 0)),
                pl.BlockSpec((bt * n_out, bt), lambda g: (0, 0)),
                pl.BlockSpec((Cout, 9 * Cin), lambda g: (0, 0)),
                pl.BlockSpec((Cout, 1), lambda g: (0, 0)),
                pl.BlockSpec((Cred, Cout), lambda g: (0, 0)),
                pl.BlockSpec((Cred, 1), lambda g: (0, 0)),
                pl.BlockSpec((Cout, Cred), lambda g: (0, 0)),
                pl.BlockSpec((Cout, 1), lambda g: (0, 0)),
                pl.BlockSpec((1, Cout), lambda g: (0, 0)),
                pl.BlockSpec((1, 1), lambda g: (0, 0)),
            ],
            out_specs=pl.BlockSpec((bt, Cout, n_out), lambda g: (g, 0, 0)),
        ),
        compiler_params=pltpu.CompilerParams(
            dimension_semantics=("parallel",),
            vmem_limit_bytes=32 * 1024 * 1024),   # > v5e's 16 MiB default
    )(x_ext, mask, wflat, bc, w1, b1, w2, b2, ws, bs)

    # drop the padding frame; output is already NCHW (no transpose needed)
    out = out[:, :, :n_full].reshape(B, Cout, Hp, Wp)
    return out[:, :, 1:H + 1, 1:W + 1]


def reference(x_nchw, params):
    """Pure-JAX f32 reference reproducing the PyTorch forward semantics."""
    B, Cin, H, W = x_nchw.shape
    Cout = params["wconv"].shape[0]
    y = jax.lax.conv_general_dilated(
        x_nchw, params["wconv"], window_strides=(1, 1),
        padding=((1, 1), (1, 1)),
        dimension_numbers=("NCHW", "OIHW", "NCHW"))
    y = y + params["bconv"][None, :, None, None]
    h = jnp.maximum(y, 0.0)
    # channel SE
    sq = h.reshape(B, Cout, -1).mean(axis=2)                        # (B, Cout)
    z1 = jnp.maximum(sq @ params["fc1_w"].T + params["fc1_b"], 0.0)
    z2 = jax.nn.sigmoid(z1 @ params["fc2_w"].T + params["fc2_b"])
    cse = h * z2[:, :, None, None]
    # spatial SE
    smap = jax.nn.sigmoid(
        jnp.einsum("bchw,c->bhw", h, params["ws_w"].reshape(Cout))
        + params["ws_b"][0])
    sse = h * smap[:, None, :, :]
    return jnp.maximum(cse, sse)


def make_params(key, dim, dim_out):
    cred = dim_out // 2          # reduction_ratio = 2
    ks = jax.random.split(key, 8)
    return {
        "wconv": 0.2 * jax.random.normal(ks[0], (dim_out, dim, 3, 3), jnp.float32),
        "bconv": 0.1 * jax.random.normal(ks[1], (dim_out,), jnp.float32),
        "fc1_w": 0.2 * jax.random.normal(ks[2], (cred, dim_out), jnp.float32),
        "fc1_b": 0.1 * jax.random.normal(ks[3], (cred,), jnp.float32),
        "fc2_w": 0.2 * jax.random.normal(ks[4], (dim_out, cred), jnp.float32),
        "fc2_b": 0.1 * jax.random.normal(ks[5], (dim_out,), jnp.float32),
        "ws_w": 0.2 * jax.random.normal(ks[6], (1, dim_out, 1, 1), jnp.float32),
        "ws_b": 0.1 * jax.random.normal(ks[7], (1,), jnp.float32),
    }


if __name__ == "__main__":
    # B=4 so the default batch_tile=2 path (batch folded into lanes) is
    # exercised while the grid still has 2 parallel steps.
    B, Cin, Cout, H, W = 4, 4, 8, 16, 16
    key = jax.random.PRNGKey(0)
    kx, kp = jax.random.split(key)
    x = jax.random.normal(kx, (B, Cin, H, W), jnp.float32)
    params = make_params(kp, Cin, Cout)

    out = jax.block_until_ready(attention_block(x, params))
    ref = jax.block_until_ready(reference(x, params))

    assert out.shape == (B, Cout, H, W)
    # tolerance loosened for the bf16-cast conv operands (f32 accumulation)
    assert jnp.allclose(out, ref, rtol=5e-2, atol=5e-2), (
        float(jnp.max(jnp.abs(out - ref))))
    print("KERNEL_OK")
</pallas_src>

<mosaic_0001>
module attributes {stable_mosaic.version = 11 : i64} {
  func.func @kernel(%arg0: i32, %arg1: memref<2x4x512xbf16, #tpu.memory_space<vmem>>, %arg2: memref<768x2xf32, #tpu.memory_space<vmem>>, %arg3: memref<8x36xbf16, #tpu.memory_space<vmem>>, %arg4: memref<8x1xf32, #tpu.memory_space<vmem>>, %arg5: memref<4x8xf32, #tpu.memory_space<vmem>>, %arg6: memref<4x1xf32, #tpu.memory_space<vmem>>, %arg7: memref<8x4xf32, #tpu.memory_space<vmem>>, %arg8: memref<8x1xf32, #tpu.memory_space<vmem>>, %arg9: memref<1x8xf32, #tpu.memory_space<vmem>>, %arg10: memref<1x1xf32, #tpu.memory_space<vmem>>, %arg11: memref<2x8x384xf32, #tpu.memory_space<vmem>>) attributes {dimension_semantics = [#tpu.dimension_semantics<parallel>], iteration_bounds = array<i64: 2>, scalar_prefetch = 0 : i64, scratch_operands = 0 : i64, tpu.core_type = #tpu.core_type<tc>, window_params = [{transform_indices = @transform_0, window_bounds = array<i64: 2, 4, 512>}, {pipeline_mode = #tpu.pipeline_mode<synchronous>, transform_indices = @transform_1, window_bounds = array<i64: 768, 2>}, {pipeline_mode = #tpu.pipeline_mode<synchronous>, transform_indices = @transform_2, window_bounds = array<i64: 8, 36>}, {pipeline_mode = #tpu.pipeline_mode<synchronous>, transform_indices = @transform_3, window_bounds = array<i64: 8, 1>}, {pipeline_mode = #tpu.pipeline_mode<synchronous>, transform_indices = @transform_4, window_bounds = array<i64: 4, 8>}, {pipeline_mode = #tpu.pipeline_mode<synchronous>, transform_indices = @transform_5, window_bounds = array<i64: 4, 1>}, {pipeline_mode = #tpu.pipeline_mode<synchronous>, transform_indices = @transform_6, window_bounds = array<i64: 8, 4>}, {pipeline_mode = #tpu.pipeline_mode<synchronous>, transform_indices = @transform_7, window_bounds = array<i64: 8, 1>}, {pipeline_mode = #tpu.pipeline_mode<synchronous>, transform_indices = @transform_8, window_bounds = array<i64: 1, 8>}, {pipeline_mode = #tpu.pipeline_mode<synchronous>, transform_indices = @transform_9, window_bounds = array<i64: 1, 1>}, {transform_indices = @transform_10, window_bounds = array<i64: 2, 8, 384>}]} {
    %c0 = arith.constant 0 : index
    %c0_0 = arith.constant 0 : index
    %c0_1 = arith.constant 0 : index
    %0 = vector.load %arg1[%c0, %c0_0, %c0_1] : memref<2x4x512xbf16, #tpu.memory_space<vmem>>, vector<1x4x384xbf16>
    %1 = vector.shape_cast %0 : vector<1x4x384xbf16> to vector<4x384xbf16>
    %c1 = arith.constant 1 : index
    %c0_2 = arith.constant 0 : index
    %c0_3 = arith.constant 0 : index
    %2 = vector.load %arg1[%c1, %c0_2, %c0_3] : memref<2x4x512xbf16, #tpu.memory_space<vmem>>, vector<1x4x384xbf16>
    %3 = vector.shape_cast %2 : vector<1x4x384xbf16> to vector<4x384xbf16>
    %4 = tpu.concatenate %1, %3 in 1 : vector<4x384xbf16>, vector<4x384xbf16> -> vector<4x768xbf16>
    %c0_4 = arith.constant 0 : index
    %c0_5 = arith.constant 0 : index
    %c1_6 = arith.constant 1 : index
    %5 = vector.load %arg1[%c0_4, %c0_5, %c1_6] : memref<2x4x512xbf16, #tpu.memory_space<vmem>>, vector<1x4x384xbf16>
    %6 = vector.shape_cast %5 : vector<1x4x384xbf16> to vector<4x384xbf16>
    %c1_7 = arith.constant 1 : index
    %c0_8 = arith.constant 0 : index
    %c1_9 = arith.constant 1 : index
    %7 = vector.load %arg1[%c1_7, %c0_8, %c1_9] : memref<2x4x512xbf16, #tpu.memory_space<vmem>>, vector<1x4x384xbf16>
    %8 = vector.shape_cast %7 : vector<1x4x384xbf16> to vector<4x384xbf16>
    %9 = tpu.concatenate %6, %8 in 1 : vector<4x384xbf16>, vector<4x384xbf16> -> vector<4x768xbf16>
    %c0_10 = arith.constant 0 : index
    %c0_11 = arith.constant 0 : index
    %c2 = arith.constant 2 : index
    %10 = vector.load %arg1[%c0_10, %c0_11, %c2] : memref<2x4x512xbf16, #tpu.memory_space<vmem>>, vector<1x4x384xbf16>
    %11 = vector.shape_cast %10 : vector<1x4x384xbf16> to vector<4x384xbf16>
    %c1_12 = arith.constant 1 : index
    %c0_13 = arith.constant 0 : index
    %c2_14 = arith.constant 2 : index
    %12 = vector.load %arg1[%c1_12, %c0_13, %c2_14] : memref<2x4x512xbf16, #tpu.memory_space<vmem>>, vector<1x4x384xbf16>
    %13 = vector.shape_cast %12 : vector<1x4x384xbf16> to vector<4x384xbf16>
    %14 = tpu.concatenate %11, %13 in 1 : vector<4x384xbf16>, vector<4x384xbf16> -> vector<4x768xbf16>
    %c0_15 = arith.constant 0 : index
    %c0_16 = arith.constant 0 : index
    %c18 = arith.constant 18 : index
    %15 = vector.load %arg1[%c0_15, %c0_16, %c18] : memref<2x4x512xbf16, #tpu.memory_space<vmem>>, vector<1x4x384xbf16>
    %16 = vector.shape_cast %15 : vector<1x4x384xbf16> to vector<4x384xbf16>
    %c1_17 = arith.constant 1 : index
    %c0_18 = arith.constant 0 : index
    %c18_19 = arith.constant 18 : index
    %17 = vector.load %arg1[%c1_17, %c0_18, %c18_19] : memref<2x4x512xbf16, #tpu.memory_space<vmem>>, vector<1x4x384xbf16>
    %18 = vector.shape_cast %17 : vector<1x4x384xbf16> to vector<4x384xbf16>
    %19 = tpu.concatenate %16, %18 in 1 : vector<4x384xbf16>, vector<4x384xbf16> -> vector<4x768xbf16>
    %c0_20 = arith.constant 0 : index
    %c0_21 = arith.constant 0 : index
    %c19 = arith.constant 19 : index
    %20 = vector.load %arg1[%c0_20, %c0_21, %c19] : memref<2x4x512xbf16, #tpu.memory_space<vmem>>, vector<1x4x384xbf16>
    %21 = vector.shape_cast %20 : vector<1x4x384xbf16> to vector<4x384xbf16>
    %c1_22 = arith.constant 1 : index
    %c0_23 = arith.constant 0 : index
    %c19_24 = arith.constant 19 : index
    %22 = vector.load %arg1[%c1_22, %c0_23, %c19_24] : memref<2x4x512xbf16, #tpu.memory_space<vmem>>, vector<1x4x384xbf16>
    %23 = vector.shape_cast %22 : vector<1x4x384xbf16> to vector<4x384xbf16>
    %24 = tpu.concatenate %21, %23 in 1 : vector<4x384xbf16>, vector<4x384xbf16> -> vector<4x768xbf16>
    %c0_25 = arith.constant 0 : index
    %c0_26 = arith.constant 0 : index
    %c20 = arith.constant 20 : index
    %25 = vector.load %arg1[%c0_25, %c0_26, %c20] : memref<2x4x512xbf16, #tpu.memory_space<vmem>>, vector<1x4x384xbf16>
    %26 = vector.shape_cast %25 : vector<1x4x384xbf16> to vector<4x384xbf16>
    %c1_27 = arith.constant 1 : index
    %c0_28 = arith.constant 0 : index
    %c20_29 = arith.constant 20 : index
    %27 = vector.load %arg1[%c1_27, %c0_28, %c20_29] : memref<2x4x512xbf16, #tpu.memory_space<vmem>>, vector<1x4x384xbf16>
    %28 = vector.shape_cast %27 : vector<1x4x384xbf16> to vector<4x384xbf16>
    %29 = tpu.concatenate %26, %28 in 1 : vector<4x384xbf16>, vector<4x384xbf16> -> vector<4x768xbf16>
    %c0_30 = arith.constant 0 : index
    %c0_31 = arith.constant 0 : index
    %c36 = arith.constant 36 : index
    %30 = vector.load %arg1[%c0_30, %c0_31, %c36] : memref<2x4x512xbf16, #tpu.memory_space<vmem>>, vector<1x4x384xbf16>
    %31 = vector.shape_cast %30 : vector<1x4x384xbf16> to vector<4x384xbf16>
    %c1_32 = arith.constant 1 : index
    %c0_33 = arith.constant 0 : index
    %c36_34 = arith.constant 36 : index
    %32 = vector.load %arg1[%c1_32, %c0_33, %c36_34] : memref<2x4x512xbf16, #tpu.memory_space<vmem>>, vector<1x4x384xbf16>
    %33 = vector.shape_cast %32 : vector<1x4x384xbf16> to vector<4x384xbf16>
    %34 = tpu.concatenate %31, %33 in 1 : vector<4x384xbf16>, vector<4x384xbf16> -> vector<4x768xbf16>
    %c0_35 = arith.constant 0 : index
    %c0_36 = arith.constant 0 : index
    %c37 = arith.constant 37 : index
    %35 = vector.load %arg1[%c0_35, %c0_36, %c37] : memref<2x4x512xbf16, #tpu.memory_space<vmem>>, vector<1x4x384xbf16>
    %36 = vector.shape_cast %35 : vector<1x4x384xbf16> to vector<4x384xbf16>
    %c1_37 = arith.constant 1 : index
    %c0_38 = arith.constant 0 : index
    %c37_39 = arith.constant 37 : index
    %37 = vector.load %arg1[%c1_37, %c0_38, %c37_39] : memref<2x4x512xbf16, #tpu.memory_space<vmem>>, vector<1x4x384xbf16>
    %38 = vector.shape_cast %37 : vector<1x4x384xbf16> to vector<4x384xbf16>
    %39 = tpu.concatenate %36, %38 in 1 : vector<4x384xbf16>, vector<4x384xbf16> -> vector<4x768xbf16>
    %c0_40 = arith.constant 0 : index
    %c0_41 = arith.constant 0 : index
    %c38 = arith.constant 38 : index
    %40 = vector.load %arg1[%c0_40, %c0_41, %c38] : memref<2x4x512xbf16, #tpu.memory_space<vmem>>, vector<1x4x384xbf16>
    %41 = vector.shape_cast %40 : vector<1x4x384xbf16> to vector<4x384xbf16>
    %c1_42 = arith.constant 1 : index
    %c0_43 = arith.constant 0 : index
    %c38_44 = arith.constant 38 : index
    %42 = vector.load %arg1[%c1_42, %c0_43, %c38_44] : memref<2x4x512xbf16, #tpu.memory_space<vmem>>, vector<1x4x384xbf16>
    %43 = vector.shape_cast %42 : vector<1x4x384xbf16> to vector<4x384xbf16>
    %44 = tpu.concatenate %41, %43 in 1 : vector<4x384xbf16>, vector<4x384xbf16> -> vector<4x768xbf16>
    %45 = tpu.concatenate %4, %9, %14, %19, %24, %29, %34, %39, %44 in 0 : vector<4x768xbf16>, vector<4x768xbf16>, vector<4x768xbf16>, vector<4x768xbf16>, vector<4x768xbf16>, vector<4x768xbf16>, vector<4x768xbf16>, vector<4x768xbf16>, vector<4x768xbf16> -> vector<36x768xbf16>
    %c0_45 = arith.constant 0 : index
    %c0_46 = arith.constant 0 : index
    %46 = vector.load %arg3[%c0_45, %c0_46] : memref<8x36xbf16, #tpu.memory_space<vmem>>, vector<8x36xbf16>
    %cst = arith.constant dense<0.000000e+00> : vector<8x768xf32>
    %47 = tpu.matmul %46, %45, %cst {dimension_numbers = #tpu.dot_dimension_numbers<[1], [0], [0], [1], [0, 0, 1, 1], [], []>} : vector<8x36xbf16>, vector<36x768xbf16>, vector<8x768xf32> -> vector<8x768xf32>
    %c0_47 = arith.constant 0 : index
    %c0_48 = arith.constant 0 : index
    %48 = vector.load %arg4[%c0_47, %c0_48] : memref<8x1xf32, #tpu.memory_space<vmem>>, vector<8x1xf32>
    %49 = vector.broadcast %48 : vector<8x1xf32> to vector<8x768xf32>
    %50 = arith.addf %47, %49 : vector<8x768xf32>
    %cst_49 = arith.constant 0.000000e+00 : f32
    %51 = vector.broadcast %cst_49 : f32 to vector<8x768xf32>
    %52 = arith.maximumf %50, %51 : vector<8x768xf32>
    %c0_50 = arith.constant 0 : index
    %c0_51 = arith.constant 0 : index
    %53 = vector.load %arg2[%c0_50, %c0_51] : memref<768x2xf32, #tpu.memory_space<vmem>>, vector<768x2xf32>
    %cst_52 = arith.constant dense<0.000000e+00> : vector<8x2xf32>
    %54 = tpu.matmul %52, %53, %cst_52 {dimension_numbers = #tpu.dot_dimension_numbers<[1], [0], [0], [1], [0, 0, 1, 1], [], []>} : vector<8x768xf32>, vector<768x2xf32>, vector<8x2xf32> -> vector<8x2xf32>
    %c0_53 = arith.constant 0 : index
    %c0_54 = arith.constant 0 : index
    %55 = vector.load %arg5[%c0_53, %c0_54] : memref<4x8xf32, #tpu.memory_space<vmem>>, vector<4x8xf32>
    %cst_55 = arith.constant dense<0.000000e+00> : vector<4x2xf32>
    %56 = tpu.matmul %55, %54, %cst_55 {dimension_numbers = #tpu.dot_dimension_numbers<[1], [0], [0], [1], [0, 0, 1, 1], [], []>} : vector<4x8xf32>, vector<8x2xf32>, vector<4x2xf32> -> vector<4x2xf32>
    %c0_56 = arith.constant 0 : index
    %c0_57 = arith.constant 0 : index
    %57 = vector.load %arg6[%c0_56, %c0_57] : memref<4x1xf32, #tpu.memory_space<vmem>>, vector<4x1xf32>
    %58 = vector.broadcast %57 : vector<4x1xf32> to vector<4x2xf32>
    %59 = arith.addf %56, %58 : vector<4x2xf32>
    %cst_58 = arith.constant 0.000000e+00 : f32
    %60 = vector.broadcast %cst_58 : f32 to vector<4x2xf32>
    %61 = arith.maximumf %59, %60 : vector<4x2xf32>
    %c0_59 = arith.constant 0 : index
    %c0_60 = arith.constant 0 : index
    %62 = vector.load %arg7[%c0_59, %c0_60] : memref<8x4xf32, #tpu.memory_space<vmem>>, vector<8x4xf32>
    %cst_61 = arith.constant dense<0.000000e+00> : vector<8x2xf32>
    %63 = tpu.matmul %62, %61, %cst_61 {dimension_numbers = #tpu.dot_dimension_numbers<[1], [0], [0], [1], [0, 0, 1, 1], [], []>} : vector<8x4xf32>, vector<4x2xf32>, vector<8x2xf32> -> vector<8x2xf32>
    %c0_62 = arith.constant 0 : index
    %c0_63 = arith.constant 0 : index
    %64 = vector.load %arg8[%c0_62, %c0_63] : memref<8x1xf32, #tpu.memory_space<vmem>>, vector<8x1xf32>
    %65 = vector.broadcast %64 : vector<8x1xf32> to vector<8x2xf32>
    %66 = arith.addf %63, %65 : vector<8x2xf32>
    %67 = arith.negf %66 : vector<8x2xf32>
    %68 = math.exp %67 : vector<8x2xf32>
    %cst_64 = arith.constant 1.000000e+00 : f32
    %69 = vector.broadcast %cst_64 : f32 to vector<8x2xf32>
    %70 = arith.addf %69, %68 : vector<8x2xf32>
    %71 = arith.divf %69, %70 : vector<8x2xf32>
    %c0_65 = arith.constant 0 : index
    %c0_66 = arith.constant 0 : index
    %72 = vector.load %arg9[%c0_65, %c0_66] : memref<1x8xf32, #tpu.memory_space<vmem>>, vector<1x8xf32>
    %cst_67 = arith.constant dense<0.000000e+00> : vector<1x768xf32>
    %73 = tpu.matmul %72, %52, %cst_67 {dimension_numbers = #tpu.dot_dimension_numbers<[1], [0], [0], [1], [0, 0, 1, 1], [], []>} : vector<1x8xf32>, vector<8x768xf32>, vector<1x768xf32> -> vector<1x768xf32>
    %c0_68 = arith.constant 0 : index
    %c0_69 = arith.constant 0 : index
    %74 = vector.load %arg10[%c0_68, %c0_69] : memref<1x1xf32, #tpu.memory_space<vmem>>, vector<1x1xf32>
    %75 = vector.broadcast %74 : vector<1x1xf32> to vector<1x768xf32>
    %76 = arith.addf %73, %75 : vector<1x768xf32>
    %77 = arith.negf %76 : vector<1x768xf32>
    %78 = math.exp %77 : vector<1x768xf32>
    %cst_70 = arith.constant 1.000000e+00 : f32
    %79 = vector.broadcast %cst_70 : f32 to vector<1x768xf32>
    %80 = arith.addf %79, %78 : vector<1x768xf32>
    %81 = arith.divf %79, %80 : vector<1x768xf32>
    %82 = vector.extract_strided_slice %52 {offsets = [0, 0], sizes = [8, 384], strides = [1, 1]} : vector<8x768xf32> to vector<8x384xf32>
    %83 = vector.extract_strided_slice %71 {offsets = [0, 0], sizes = [8, 1], strides = [1, 1]} : vector<8x2xf32> to vector<8x1xf32>
    %84 = vector.extract_strided_slice %81 {offsets = [0, 0], sizes = [1, 384], strides = [1, 1]} : vector<1x768xf32> to vector<1x384xf32>
    %85 = vector.broadcast %83 : vector<8x1xf32> to vector<8x384xf32>
    %86 = vector.broadcast %84 : vector<1x384xf32> to vector<8x384xf32>
    %87 = arith.maximumf %85, %86 : vector<8x384xf32>
    %88 = arith.mulf %82, %87 : vector<8x384xf32>
    %c0_71 = arith.constant 0 : index
    %c0_72 = arith.constant 0 : index
    %c0_73 = arith.constant 0 : index
    %89 = vector.load %arg11[%c0_71, %c0_72, %c0_73] : memref<2x8x384xf32, #tpu.memory_space<vmem>>, vector<1x8x384xf32>
    %90 = vector.shape_cast %89 : vector<1x8x384xf32> to vector<8x384xf32>
    %91 = vector.shape_cast %88 : vector<8x384xf32> to vector<1x8x384xf32>
    tpu.vector_store %arg11[%c0_71, %c0_72, %c0_73], %91 {strides = array<i32>} : memref<2x8x384xf32, #tpu.memory_space<vmem>>, vector<1x8x384xf32>,
    %92 = vector.extract_strided_slice %52 {offsets = [0, 384], sizes = [8, 384], strides = [1, 1]} : vector<8x768xf32> to vector<8x384xf32>
    %93 = vector.extract_strided_slice %71 {offsets = [0, 1], sizes = [8, 1], strides = [1, 1]} : vector<8x2xf32> to vector<8x1xf32>
    %94 = vector.extract_strided_slice %81 {offsets = [0, 384], sizes = [1, 384], strides = [1, 1]} : vector<1x768xf32> to vector<1x384xf32>
    %95 = vector.broadcast %93 : vector<8x1xf32> to vector<8x384xf32>
    %96 = vector.broadcast %94 : vector<1x384xf32> to vector<8x384xf32>
    %97 = arith.maximumf %95, %96 : vector<8x384xf32>
    %98 = arith.mulf %92, %97 : vector<8x384xf32>
    %c1_74 = arith.constant 1 : index
    %c0_75 = arith.constant 0 : index
    %c0_76 = arith.constant 0 : index
    %99 = vector.load %arg11[%c1_74, %c0_75, %c0_76] : memref<2x8x384xf32, #tpu.memory_space<vmem>>, vector<1x8x384xf32>
    %100 = vector.shape_cast %99 : vector<1x8x384xf32> to vector<8x384xf32>
    %101 = vector.shape_cast %98 : vector<8x384xf32> to vector<1x8x384xf32>
    tpu.vector_store %arg11[%c1_74, %c0_75, %c0_76], %101 {strides = array<i32>} : memref<2x8x384xf32, #tpu.memory_space<vmem>>, vector<1x8x384xf32>,
    return
  }
  func.func @transform_0(%arg0: i32) -> (i32, i32, i32) {
    %c0_i32 = arith.constant 0 : i32
    %c0_i32_0 = arith.constant 0 : i32
    %c0_i32_1 = arith.constant 0 : i32
    return %arg0, %c0_i32, %c0_i32_0 : i32, i32, i32
  }
  func.func @transform_1(%arg0: i32) -> (i32, i32) {
    %c0_i32 = arith.constant 0 : i32
    %c0_i32_0 = arith.constant 0 : i32
    %c0_i32_1 = arith.constant 0 : i32
    return %c0_i32, %c0_i32_0 : i32, i32
  }
  func.func @transform_2(%arg0: i32) -> (i32, i32) {
    %c0_i32 = arith.constant 0 : i32
    %c0_i32_0 = arith.constant 0 : i32
    %c0_i32_1 = arith.constant 0 : i32
    return %c0_i32, %c0_i32_0 : i32, i32
  }
  func.func @transform_3(%arg0: i32) -> (i32, i32) {
    %c0_i32 = arith.constant 0 : i32
    %c0_i32_0 = arith.constant 0 : i32
    %c0_i32_1 = arith.constant 0 : i32
    return %c0_i32, %c0_i32_0 : i32, i32
  }
  func.func @transform_4(%arg0: i32) -> (i32, i32) {
    %c0_i32 = arith.constant 0 : i32
    %c0_i32_0 = arith.constant 0 : i32
    %c0_i32_1 = arith.constant 0 : i32
    return %c0_i32, %c0_i32_0 : i32, i32
  }
  func.func @transform_5(%arg0: i32) -> (i32, i32) {
    %c0_i32 = arith.constant 0 : i32
    %c0_i32_0 = arith.constant 0 : i32
    %c0_i32_1 = arith.constant 0 : i32
    return %c0_i32, %c0_i32_0 : i32, i32
  }
  func.func @transform_6(%arg0: i32) -> (i32, i32) {
    %c0_i32 = arith.constant 0 : i32
    %c0_i32_0 = arith.constant 0 : i32
    %c0_i32_1 = arith.constant 0 : i32
    return %c0_i32, %c0_i32_0 : i32, i32
  }
  func.func @transform_7(%arg0: i32) -> (i32, i32) {
    %c0_i32 = arith.constant 0 : i32
    %c0_i32_0 = arith.constant 0 : i32
    %c0_i32_1 = arith.constant 0 : i32
    return %c0_i32, %c0_i32_0 : i32, i32
  }
  func.func @transform_8(%arg0: i32) -> (i32, i32) {
    %c0_i32 = arith.constant 0 : i32
    %c0_i32_0 = arith.constant 0 : i32
    %c0_i32_1 = arith.constant 0 : i32
    return %c0_i32, %c0_i32_0 : i32, i32
  }
  func.func @transform_9(%arg0: i32) -> (i32, i32) {
    %c0_i32 = arith.constant 0 : i32
    %c0_i32_0 = arith.constant 0 : i32
    %c0_i32_1 = arith.constant 0 : i32
    return %c0_i32, %c0_i32_0 : i32, i32
  }
  func.func @transform_10(%arg0: i32) -> (i32, i32, i32) {
    %c0_i32 = arith.constant 0 : i32
    %c0_i32_0 = arith.constant 0 : i32
    %c0_i32_1 = arith.constant 0 : i32
    return %arg0, %c0_i32, %c0_i32_0 : i32, i32, i32
  }
}

</mosaic_0001>

<llo_original>
// kernel: tpu_custom_call.1
$region0: #{tpu_custom_call.1}
  #allocation0 [shape = 'u32[]', space=smem, size = 0x4, offset = 0x4, fixed_abs, tag = 'smem constant byte address 0x4 - core index']
  #allocation1 [shape = 'u32[144,128]{1,0:T(1,128)}', space=vmem, size = 0x12000, scoped, tag = 'internal scratch']
  #allocation2 [shape = 'f32[1,1]{1,0:T(1,128)S(1)}', space=vmem, size = 0x200, scoped, tag = 'scoped memory for tpu_custom_call.1']
  %s0 = inlined_call_operand.vmem [shape: bf16[4,4,512], index: 0, kind: input, shape index: {}]
  %s1 = inlined_call_operand.vmem [shape: f32[768,2], index: 1, kind: input, shape index: {}]
  %s2 = inlined_call_operand.vmem [shape: bf16[8,36], index: 2, kind: input, shape index: {}]
  %s3 = inlined_call_operand.vmem [shape: f32[8,1], index: 3, kind: input, shape index: {}]
  %s4 = inlined_call_operand.vmem [shape: f32[4,8], index: 4, kind: input, shape index: {}]
  %s5 = inlined_call_operand.vmem [shape: f32[4,1], index: 5, kind: input, shape index: {}]
  %s6 = inlined_call_operand.vmem [shape: f32[8,4], index: 6, kind: input, shape index: {}]
  %s7 = inlined_call_operand.vmem [shape: f32[8,1], index: 7, kind: input, shape index: {}]
  %s8 = inlined_call_operand.vmem [shape: f32[1,8], index: 8, kind: input, shape index: {}]
  %s9 = inlined_call_operand.<no memory space> [shape: f32[1,1], index: 9, kind: input, shape index: {}]
  %s10 = inlined_call_operand.hbm [shape: f32[4,8,384], index: 10, kind: output, shape index: {}]
  %s11 = sld [smem:[#allocation0]]
  $region73: #{tpu_custom_call.1} parent=0
    _
  %s13 = ssub.s32 1, %s11
  %s14 = scalar_select 0, %s13, %s11
  %v15 = vstv %s9
  %16 = vst [vmem:[#allocation2] sm:$0x1] %v15
  $region1: #{tpu_custom_call.1} parent=0
    #allocation3 [shape = 'u8[49152]{0}', space=vmem, size = 0xc000, scoped, tag = 'output window, operand 0']
    #allocation4 [shape = 's32[2]{0}', space=sflag, size = 0x8, scoped, tag = 'scoped memory for tpu_custom_call.1']
    %17 = vsyncpa [#allocation4], 0
    %s18 = scalar_lea.sflag [#allocation4], 1
    %19 = vsyncpa %s18, 0
    loop: start=0, step=1, limit=4
    $region2: #{tpu_custom_call.1} parent=1 // loop_pre_header
      _
    $region3: #{tpu_custom_call.1} parent=1 // loop_header
      %s21 = sphi 0, %s25
      %p22 = scmp.ge.s32.totalorder %s21, 4
      %s31 = sphi 0, %s33
      %s34 = sphi 0, %s31
      %s35 = sphi 0, %s34
      %s51 = sphi 0, %s35
      %s55 = sphi 0, %s55
      %s57 = sphi 0, %s55
      %s58 = sphi 0, %s57
      %s72 = sphi 0, %s58
      %s76 = sphi 0, %s76
      %s78 = sphi 0, %s76
      %s79 = sphi 0, %s78
      %s93 = sphi 0, %s79
      %s97 = sphi 0, %s97
      %s99 = sphi 0, %s97
      %s100 = sphi 0, %s99
      %s114 = sphi 0, %s100
      %s118 = sphi 0, %s118
      %s120 = sphi 0, %s118
      %s121 = sphi 0, %s120
      %s135 = sphi 0, %s121
      %s139 = sphi 0, %s139
      %s141 = sphi 0, %s139
      %s142 = sphi 0, %s141
      %s156 = sphi 0, %s142
      %s160 = sphi 0, %s160
      %s162 = sphi 0, %s160
      %s163 = sphi 0, %s162
      %s177 = sphi 0, %s163
      %s181 = sphi 0, %s181
      %s183 = sphi 0, %s181
      %s184 = sphi 0, %s183
      %s198 = sphi 0, %s184
      %s202 = sphi 0, %s202
      %s204 = sphi 0, %s202
      %s205 = sphi 0, %s204
      %s219 = sphi 0, %s205
      %s223 = sphi 0, %s223
      %s225 = sphi 0, %s223
      %s226 = sphi 0, %s225
      %s240 = sphi 0, %s226
      %s246 = sphi 0, %s248
      %s249 = sphi 0, %s246
      %s250 = sphi 0, %s249
      %s266 = sphi 0, %s250
    $region4: #{tpu_custom_call.1} parent=1 // loop_header_branch
      %24 = sbr.rel (%p22) target = $region8
    $region5: #{tpu_custom_call.1} parent=1 // loop_body
      %s26 = ssub.s32 %s21, 1
      %s27 = ssub.s32 %s21, 2
      %s28 = sadd.s32 %s21, 1
      %s29 = ssub.s32 %s21, %s28
      %p30 = scmp.eq.s32.totalorder %s29, 0
      %s32 = sadd.s32 %s31, 1
      %s33 = scalar_select %p30, %s31, %s32
      %p36 = pneg %p30
      %p37 = scmp.eq.s32.totalorder %s21, 1
      %p38 = por %p36, %p37
      %p39 = scmp.ne.s32.totalorder %s31, %s34
      %p40 = scmp.eq.s32.totalorder %s21, 0
      %p41 = por %p39, %p40
      %p42 = scmp.ne.s32.totalorder %s31, %s34
      %p43 = scmp.eq.s32.totalorder %s26, 1
      %p44 = por %p42, %p43
      %p45 = scmp.ne.s32.totalorder %s34, %s35
      %p46 = scmp.eq.s32.totalorder %s26, 0
      %p47 = por %p45, %p46
      %p48 = scmp.ne.s32.totalorder %s34, %s35
      %p49 = scmp.eq.s32.totalorder %s27, 1
      %p50 = por %p48, %p49
      %p52 = scmp.ne.s32.totalorder %s35, %s51
      %p53 = scmp.eq.s32.totalorder %s27, 0
      %p54 = por %p52, %p53
      %s56 = sadd.s32 %s55, 1
      %p59 = scmp.eq.s32.totalorder %s21, 1
      %p60 = scmp.ne.s32.totalorder %s55, %s57
      %p61 = scmp.eq.s32.totalorder %s21, 0
      %p62 = por %p60, %p61
      %p63 = scmp.ne.s32.totalorder %s55, %s57
      %p64 = scmp.eq.s32.totalorder %s26, 1
      %p65 = por %p63, %p64
      %p66 = scmp.ne.s32.totalorder %s57, %s58
      %p67 = scmp.eq.s32.totalorder %s26, 0
      %p68 = por %p66, %p67
      %p69 = scmp.ne.s32.totalorder %s57, %s58
      %p70 = scmp.eq.s32.totalorder %s27, 1
      %p71 = por %p69, %p70
      %p73 = scmp.ne.s32.totalorder %s58, %s72
      %p74 = scmp.eq.s32.totalorder %s27, 0
      %p75 = por %p73, %p74
      %s77 = sadd.s32 %s76, 1
      %p80 = scmp.eq.s32.totalorder %s21, 1
      %p81 = scmp.ne.s32.totalorder %s76, %s78
      %p82 = scmp.eq.s32.totalorder %s21, 0
      %p83 = por %p81, %p82
      %p84 = scmp.ne.s32.totalorder %s76, %s78
      %p85 = scmp.eq.s32.totalorder %s26, 1
      %p86 = por %p84, %p85
      %p87 = scmp.ne.s32.totalorder %s78, %s79
      %p88 = scmp.eq.s32.totalorder %s26, 0
      %p89 = por %p87, %p88
      %p90 = scmp.ne.s32.totalorder %s78, %s79
      %p91 = scmp.eq.s32.totalorder %s27, 1
      %p92 = por %p90, %p91
      %p94 = scmp.ne.s32.totalorder %s79, %s93
      %p95 = scmp.eq.s32.totalorder %s27, 0
      %p96 = por %p94, %p95
      %s98 = sadd.s32 %s97, 1
      %p101 = scmp.eq.s32.totalorder %s21, 1
      %p102 = scmp.ne.s32.totalorder %s97, %s99
      %p103 = scmp.eq.s32.totalorder %s21, 0
      %p104 = por %p102, %p103
      %p105 = scmp.ne.s32.totalorder %s97, %s99
      %p106 = scmp.eq.s32.totalorder %s26, 1
      %p107 = por %p105, %p106
      %p108 = scmp.ne.s32.totalorder %s99, %s100
      %p109 = scmp.eq.s32.totalorder %s26, 0
      %p110 = por %p108, %p109
      %p111 = scmp.ne.s32.totalorder %s99, %s100
      %p112 = scmp.eq.s32.totalorder %s27, 1
      %p113 = por %p111, %p112
      %p115 = scmp.ne.s32.totalorder %s100, %s114
      %p116 = scmp.eq.s32.totalorder %s27, 0
      %p117 = por %p115, %p116
      %s119 = sadd.s32 %s118, 1
      %p122 = scmp.eq.s32.totalorder %s21, 1
      %p123 = scmp.ne.s32.totalorder %s118, %s120
      %p124 = scmp.eq.s32.totalorder %s21, 0
      %p125 = por %p123, %p124
      %p126 = scmp.ne.s32.totalorder %s118, %s120
      %p127 = scmp.eq.s32.totalorder %s26, 1
      %p128 = por %p126, %p127
      %p129 = scmp.ne.s32.totalorder %s120, %s121
      %p130 = scmp.eq.s32.totalorder %s26, 0
      %p131 = por %p129, %p130
      %p132 = scmp.ne.s32.totalorder %s120, %s121
      %p133 = scmp.eq.s32.totalorder %s27, 1
      %p134 = por %p132, %p133
      %p136 = scmp.ne.s32.totalorder %s121, %s135
      %p137 = scmp.eq.s32.totalorder %s27, 0
      %p138 = por %p136, %p137
      %s140 = sadd.s32 %s139, 1
      %p143 = scmp.eq.s32.totalorder %s21, 1
      %p144 = scmp.ne.s32.totalorder %s139, %s141
      %p145 = scmp.eq.s32.totalorder %s21, 0
      %p146 = por %p144, %p145
      %p147 = scmp.ne.s32.totalorder %s139, %s141
      %p148 = scmp.eq.s32.totalorder %s26, 1
      %p149 = por %p147, %p148
      %p150 = scmp.ne.s32.totalorder %s141, %s142
      %p151 = scmp.eq.s32.totalorder %s26, 0
      %p152 = por %p150, %p151
      %p153 = scmp.ne.s32.totalorder %s141, %s142
      %p154 = scmp.eq.s32.totalorder %s27, 1
      %p155 = por %p153, %p154
      %p157 = scmp.ne.s32.totalorder %s142, %s156
      %p158 = scmp.eq.s32.totalorder %s27, 0
      %p159 = por %p157, %p158
      %s161 = sadd.s32 %s160, 1
      %p164 = scmp.eq.s32.totalorder %s21, 1
      %p165 = scmp.ne.s32.totalorder %s160, %s162
      %p166 = scmp.eq.s32.totalorder %s21, 0
      %p167 = por %p165, %p166
      %p168 = scmp.ne.s32.totalorder %s160, %s162
      %p169 = scmp.eq.s32.totalorder %s26, 1
      %p170 = por %p168, %p169
      %p171 = scmp.ne.s32.totalorder %s162, %s163
      %p172 = scmp.eq.s32.totalorder %s26, 0
      %p173 = por %p171, %p172
      %p174 = scmp.ne.s32.totalorder %s162, %s163
      %p175 = scmp.eq.s32.totalorder %s27, 1
      %p176 = por %p174, %p175
      %p178 = scmp.ne.s32.totalorder %s163, %s177
      %p179 = scmp.eq.s32.totalorder %s27, 0
      %p180 = por %p178, %p179
      %s182 = sadd.s32 %s181, 1
      %p185 = scmp.eq.s32.totalorder %s21, 1
      %p186 = scmp.ne.s32.totalorder %s181, %s183
      %p187 = scmp.eq.s32.totalorder %s21, 0
      %p188 = por %p186, %p187
      %p189 = scmp.ne.s32.totalorder %s181, %s183
      %p190 = scmp.eq.s32.totalorder %s26, 1
      %p191 = por %p189, %p190
      %p192 = scmp.ne.s32.totalorder %s183, %s184
      %p193 = scmp.eq.s32.totalorder %s26, 0
      %p194 = por %p192, %p193
      %p195 = scmp.ne.s32.totalorder %s183, %s184
      %p196 = scmp.eq.s32.totalorder %s27, 1
      %p197 = por %p195, %p196
      %p199 = scmp.ne.s32.totalorder %s184, %s198
      %p200 = scmp.eq.s32.totalorder %s27, 0
      %p201 = por %p199, %p200
      %s203 = sadd.s32 %s202, 1
      %p206 = scmp.eq.s32.totalorder %s21, 1
      %p207 = scmp.ne.s32.totalorder %s202, %s204
      %p208 = scmp.eq.s32.totalorder %s21, 0
      %p209 = por %p207, %p208
      %p210 = scmp.ne.s32.totalorder %s202, %s204
      %p211 = scmp.eq.s32.totalorder %s26, 1
      %p212 = por %p210, %p211
      %p213 = scmp.ne.s32.totalorder %s204, %s205
      %p214 = scmp.eq.s32.totalorder %s26, 0
      %p215 = por %p213, %p214
      %p216 = scmp.ne.s32.totalorder %s204, %s205
      %p217 = scmp.eq.s32.totalorder %s27, 1
      %p218 = por %p216, %p217
      %p220 = scmp.ne.s32.totalorder %s205, %s219
      %p221 = scmp.eq.s32.totalorder %s27, 0
      %p222 = por %p220, %p221
      %s224 = sadd.s32 %s223, 1
      %p227 = scmp.eq.s32.totalorder %s21, 1
      %p228 = scmp.ne.s32.totalorder %s223, %s225
      %p229 = scmp.eq.s32.totalorder %s21, 0
      %p230 = por %p228, %p229
      %p231 = scmp.ne.s32.totalorder %s223, %s225
      %p232 = scmp.eq.s32.totalorder %s26, 1
      %p233 = por %p231, %p232
      %p234 = scmp.ne.s32.totalorder %s225, %s226
      %p235 = scmp.eq.s32.totalorder %s26, 0
      %p236 = por %p234, %p235
      %p237 = scmp.ne.s32.totalorder %s225, %s226
      %p238 = scmp.eq.s32.totalorder %s27, 1
      %p239 = por %p237, %p238
      %p241 = scmp.ne.s32.totalorder %s226, %s240
      %p242 = scmp.eq.s32.totalorder %s27, 0
      %p243 = por %p241, %p242
      %s244 = ssub.s32 %s21, %s28
      %p245 = scmp.eq.s32.totalorder %s244, 0
      %s247 = sadd.s32 %s246, 1
      %s248 = scalar_select %p245, %s246, %s247
      %p251 = pneg %p245
      %p252 = scmp.eq.s32.totalorder %s21, 1
      %p253 = por %p251, %p252
      %p254 = scmp.ne.s32.totalorder %s246, %s249
      %p255 = scmp.eq.s32.totalorder %s21, 0
      %p256 = por %p254, %p255
      %p257 = scmp.ne.s32.totalorder %s246, %s249
      %p258 = scmp.eq.s32.totalorder %s26, 1
      %p259 = por %p257, %p258
      %p260 = scmp.ne.s32.totalorder %s249, %s250
      %p261 = scmp.eq.s32.totalorder %s26, 0
      %p262 = por %p260, %p261
      %p263 = scmp.ne.s32.totalorder %s249, %s250
      %p264 = scmp.eq.s32.totalorder %s27, 1
      %p265 = por %p263, %p264
      %p267 = scmp.ne.s32.totalorder %s250, %s266
      %p268 = scmp.eq.s32.totalorder %s27, 0
      %p269 = por %p267, %p268
      %p270 = scmp.le.s32.totalorder 1, %s21
      %p271 = scmp.lt.s32.totalorder %s21, 3
      %p272 = pnand %p270, %p271
      %p273 = pneg %p272
      // Predicated region
      $region9: #{tpu_custom_call.1} parent=5 // pred_check
        _
      $region10: #{tpu_custom_call.1} parent=5 // pred_check_branch
        %275 = sbr.rel (%p272) target = $region12
      $region11: #{tpu_custom_call.1} parent=5 // pred_region
        %s276 = ssub.s32 %s21, 1
        // Predicated region
        $region13: #{tpu_custom_call.1} parent=11 // pred_check
          %p277 = pneg %p68
        $region14: #{tpu_custom_call.1} parent=11 // pred_check_branch
          %279 = sbr.rel (%p277) target = $region16
        $region15: #{tpu_custom_call.1} parent=11 // pred_region
          _
        $region16: #{tpu_custom_call.1} parent=11 // pred_fallthru
          _
        // Predicated region
        $region17: #{tpu_custom_call.1} parent=11 // pred_check
          %p280 = pneg %p89
        $region18: #{tpu_custom_call.1} parent=11 // pred_check_branch
          %282 = sbr.rel (%p280) target = $region20
        $region19: #{tpu_custom_call.1} parent=11 // pred_region
          _
        $region20: #{tpu_custom_call.1} parent=11 // pred_fallthru
          _
        // Predicated region
        $region21: #{tpu_custom_call.1} parent=11 // pred_check
          %p283 = pneg %p110
        $region22: #{tpu_custom_call.1} parent=11 // pred_check_branch
          %285 = sbr.rel (%p283) target = $region24
        $region23: #{tpu_custom_call.1} parent=11 // pred_region
          _
        $region24: #{tpu_custom_call.1} parent=11 // pred_fallthru
          _
        // Predicated region
        $region25: #{tpu_custom_call.1} parent=11 // pred_check
          %p286 = pneg %p131
        $region26: #{tpu_custom_call.1} parent=11 // pred_check_branch
          %288 = sbr.rel (%p286) target = $region28
        $region27: #{tpu_custom_call.1} parent=11 // pred_region
          _
        $region28: #{tpu_custom_call.1} parent=11 // pred_fallthru
          _
        // Predicated region
        $region29: #{tpu_custom_call.1} parent=11 // pred_check
          %p289 = pneg %p152
        $region30: #{tpu_custom_call.1} parent=11 // pred_check_branch
          %291 = sbr.rel (%p289) target = $region32
        $region31: #{tpu_custom_call.1} parent=11 // pred_region
          _
        $region32: #{tpu_custom_call.1} parent=11 // pred_fallthru
          _
        // Predicated region
        $region33: #{tpu_custom_call.1} parent=11 // pred_check
          %p292 = pneg %p173
        $region34: #{tpu_custom_call.1} parent=11 // pred_check_branch
          %294 = sbr.rel (%p292) target = $region36
        $region35: #{tpu_custom_call.1} parent=11 // pred_region
          _
        $region36: #{tpu_custom_call.1} parent=11 // pred_fallthru
          _
        // Predicated region
        $region37: #{tpu_custom_call.1} parent=11 // pred_check
          %p295 = pneg %p194
        $region38: #{tpu_custom_call.1} parent=11 // pred_check_branch
          %297 = sbr.rel (%p295) target = $region40
        $region39: #{tpu_custom_call.1} parent=11 // pred_region
          _
        $region40: #{tpu_custom_call.1} parent=11 // pred_fallthru
          _
        // Predicated region
        $region41: #{tpu_custom_call.1} parent=11 // pred_check
          %p298 = pneg %p215
        $region42: #{tpu_custom_call.1} parent=11 // pred_check_branch
          %300 = sbr.rel (%p298) target = $region44
        $region43: #{tpu_custom_call.1} parent=11 // pred_region
          _
        $region44: #{tpu_custom_call.1} parent=11 // pred_fallthru
          _
        // Predicated region
        $region45: #{tpu_custom_call.1} parent=11 // pred_check
          %p301 = pneg %p236
        $region46: #{tpu_custom_call.1} parent=11 // pred_check_branch
          %303 = sbr.rel (%p301) target = $region48
        $region47: #{tpu_custom_call.1} parent=11 // pred_region
          _
        $region48: #{tpu_custom_call.1} parent=11 // pred_fallthru
          _
      $region12: #{tpu_custom_call.1} parent=5 // pred_fallthru
        _
      %p304 = scmp.lt.s32.totalorder %s21, 2
      // Predicated region
      $region49: #{tpu_custom_call.1} parent=5 // pred_check
        %p305 = pneg %p304
      $region50: #{tpu_custom_call.1} parent=5 // pred_check_branch
        %307 = sbr.rel (%p305) target = $region52
      $region51: #{tpu_custom_call.1} parent=5 // pred_region
        // Predicated region
        $region53: #{tpu_custom_call.1} parent=51 // pred_check
          %p308 = pneg %p41
        $region54: #{tpu_custom_call.1} parent=51 // pred_check_branch
          %310 = sbr.rel (%p308) target = $region56
        $region55: #{tpu_custom_call.1} parent=51 // pred_region
          %s311 = smul.u32 2, %s21
          %p312 = scmp.lt.s32.totalorder %s311, 3
          %s313 = scalar_select %p312, %s311, 3
          %s314 = smul.addr %s313, 4
          %s315 = smul.addr %s314, 2
          %s316 = scalar_lea.vmem %s0, %s315
          %s317 = smul.u32 2, %s21
        $region56: #{tpu_custom_call.1} parent=51 // pred_fallthru
          _
      $region52: #{tpu_custom_call.1} parent=5 // pred_fallthru
        _
      %p318 = scmp.le.s32.totalorder 1, %s21
      %p319 = scmp.lt.s32.totalorder %s21, 3
      %p320 = pnand %p318, %p319
      %p321 = pneg %p320
      // Predicated region
      $region57: #{tpu_custom_call.1} parent=5 // pred_check
        _
      $region58: #{tpu_custom_call.1} parent=5 // pred_check_branch
        %323 = sbr.rel (%p320) target = $region60
      $region59: #{tpu_custom_call.1} parent=5 // pred_region
        %s324 = ssub.s32 %s21, 1
        %s325 = smul.u32 2, %s26
        %p326 = scmp.lt.s32.totalorder %s325, 3
        %s327 = scalar_select %p326, %s325, 3
        %s328 = smul.addr %s327, 4
        %s329 = smul.addr %s328, 2
        %s330 = scalar_lea.vmem %s0, %s329
        %p331 = pneg %p47
        %p332 = pneg %p44
        %p333 = pneg %p68
        %p334 = pneg %p65
        %p335 = pneg %p89
        %p336 = pneg %p86
        %p337 = pneg %p110
        %p338 = pneg %p107
        %p339 = pneg %p131
        %p340 = pneg %p128
        %p341 = pneg %p152
        %p342 = pneg %p149
        %p343 = pneg %p173
        %p344 = pneg %p170
        %p345 = pneg %p194
        %p346 = pneg %p191
        %p347 = pneg %p215
        %p348 = pneg %p212
        %p349 = pneg %p236
        %p350 = pneg %p233
        %p351 = pneg %p262
        %p352 = pneg %p259
        %s353 = sand.u32 %s249, 1
        %s354 = scalar_lea.sflag [#allocation4], %s353
        %s355 = sand.u32 %s249, 1
        %s356 = smul.addr %s355, 48
        %s357 = scalar_lea.vmem [#allocation3], %s356
        %s358 = smul.u32 2, %s26
        %p359 = scmp.lt.s32.totalorder %s358, 3
        %s360 = scalar_select %p359, %s358, 3
        %s361 = smul.addr %s360, 4
        %s362 = smul.addr %s361, 2
        %s363 = scalar_lea.vmem %s0, %s362
        %s364 = smul.u32 2, %s26
        %s365 = smul.u32 2, %s26
        %v367 = vld [vmem:[%s363] sm:$0x3f]
        %s368 = scalar_lea.vmem %s363, 8
        %v369 = vld [vmem:[%s368] sm:$0x3f]
        %v371 = vcombine.high %v367, %v367
        %v373 = vunpack.c.l.s4 1983009808
        %v374 = vunpack.c.0.s8 %v373
        %v375 = vlaneseq
        %v376 = vshrl.u32 %v375, 7
        %v377 = vsub.s32 %v374, %v376
        %v378 = vrot.slane %v367, %v377
        %v380 = vunpack.c.l.s4 1983009808
        %v381 = vunpack.c.0.s8 %v380
        %v382 = vlaneseq
        %v383 = vshrl.u32 %v382, 7
        %v384 = vsub.s32 %v381, %v383
        %v385 = vrot.slane %v371, %v384
        %v386 = vcombine.high %v378, %v378
        %v388 = vcombine.high %v369, %v369
        %v390 = vunpack.c.l.s4 1983009808
        %v391 = vunpack.c.0.s8 %v390
        %v392 = vlaneseq
        %v393 = vshrl.u32 %v392, 7
        %v394 = vsub.s32 %v391, %v393
        %v395 = vrot.slane %v369, %v394
        %v397 = vunpack.c.l.s4 1983009808
        %v398 = vunpack.c.0.s8 %v397
        %v399 = vlaneseq
        %v400 = vshrl.u32 %v399, 7
        %v401 = vsub.s32 %v398, %v400
        %v402 = vrot.slane %v388, %v401
        %v403 = vcombine.high %v395, %v395
        %v404 = vld [vmem:[%s363] sm:$0xff]
        %v405 = vld [vmem:[%s368] sm:$0xff]
        %v407 = vcombine.high %v404, %v404
        %v409 = vunpack.c.l.s4 1983009808
        %v410 = vunpack.c.0.s8 %v409
        %v411 = vlaneseq
        %v412 = vshrl.u32 %v411, 7
        %v413 = vsub.s32 %v410, %v412
        %v414 = vrot.slane %v404, %v413
        %v416 = vunpack.c.l.s4 1983009808
        %v417 = vunpack.c.0.s8 %v416
        %v418 = vlaneseq
        %v419 = vshrl.u32 %v418, 7
        %v420 = vsub.s32 %v417, %v419
        %v421 = vrot.slane %v407, %v420
        %v422 = vcombine.high %v414, %v414
        %v423 = vcombine.high %v421, %v421
        %424 = vrot.lane.b32.xlu0 %v414, 127
        %v425 = vpop.permute.xlu0 %424
        %426 = vrot.lane.b32.xlu0 %v422, 127
        %v427 = vpop.permute.xlu0 %426
        %428 = vrot.lane.b32.xlu0 %v421, 127
        %v429 = vpop.permute.xlu0 %428
        %430 = vrot.lane.b32.xlu0 %v423, 127
        %v431 = vpop.permute.xlu0 %430
        %vm432 = vcmask 1039360
        %v433 = vsel %vm432, %v425, %v427
        %v434 = vsel %vm432, %v427, %v429
        %v435 = vsel %vm432, %v429, %v431
        %v437 = vcombine.high %v405, %v405
        %v439 = vunpack.c.l.s4 1983009808
        %v440 = vunpack.c.0.s8 %v439
        %v441 = vlaneseq
        %v442 = vshrl.u32 %v441, 7
        %v443 = vsub.s32 %v440, %v442
        %v444 = vrot.slane %v405, %v443
        %v446 = vunpack.c.l.s4 1983009808
        %v447 = vunpack.c.0.s8 %v446
        %v448 = vlaneseq
        %v449 = vshrl.u32 %v448, 7
        %v450 = vsub.s32 %v447, %v449
        %v451 = vrot.slane %v437, %v450
        %v452 = vcombine.high %v444, %v444
        %v453 = vcombine.high %v451, %v451
        %454 = vrot.lane.b32.xlu0 %v444, 127
        %v455 = vpop.permute.xlu0 %454
        %456 = vrot.lane.b32.xlu0 %v452, 127
        %v457 = vpop.permute.xlu0 %456
        %458 = vrot.lane.b32.xlu0 %v451, 127
        %v459 = vpop.permute.xlu0 %458
        %460 = vrot.lane.b32.xlu0 %v453, 127
        %v461 = vpop.permute.xlu0 %460
        %v462 = vsel %vm432, %v455, %v457
        %v463 = vsel %vm432, %v457, %v459
        %v464 = vsel %vm432, %v459, %v461
        %465 = vrot.lane.b32.xlu0 %v414, 126
        %v466 = vpop.permute.xlu0 %465
        %467 = vrot.lane.b32.xlu0 %v422, 126
        %v468 = vpop.permute.xlu0 %467
        %469 = vrot.lane.b32.xlu0 %v421, 126
        %v470 = vpop.permute.xlu0 %469
        %471 = vrot.lane.b32.xlu0 %v423, 126
        %v472 = vpop.permute.xlu0 %471
        %vm473 = vcmask 1031168
        %v474 = vsel %vm473, %v466, %v468
        %v475 = vsel %vm473, %v468, %v470
        %v476 = vsel %vm473, %v470, %v472
        %477 = vrot.lane.b32.xlu0 %v444, 126
        %v478 = vpop.permute.xlu0 %477
        %479 = vrot.lane.b32.xlu0 %v452, 126
        %v480 = vpop.permute.xlu0 %479
        %481 = vrot.lane.b32.xlu0 %v451, 126
        %v482 = vpop.permute.xlu0 %481
        %483 = vrot.lane.b32.xlu0 %v453, 126
        %v484 = vpop.permute.xlu0 %483
        %v485 = vsel %vm473, %v478, %v480
        %v486 = vsel %vm473, %v480, %v482
        %v487 = vsel %vm473, %v482, %v484
        %488 = vrot.lane.b32.xlu0 %v414, 110
        %v489 = vpop.permute.xlu0 %488
        %490 = vrot.lane.b32.xlu0 %v422, 110
        %v491 = vpop.permute.xlu0 %490
        %492 = vrot.lane.b32.xlu0 %v421, 110
        %v493 = vpop.permute.xlu0 %492
        %494 = vrot.lane.b32.xlu0 %v423, 110
        %v495 = vpop.permute.xlu0 %494
        %vm496 = vcmask 900096
        %v497 = vsel %vm496, %v489, %v491
        %v498 = vsel %vm496, %v491, %v493
        %v499 = vsel %vm496, %v493, %v495
        %500 = vrot.lane.b32.xlu0 %v444, 110
        %v501 = vpop.permute.xlu0 %500
        %502 = vrot.lane.b32.xlu0 %v452, 110
        %v503 = vpop.permute.xlu0 %502
        %504 = vrot.lane.b32.xlu0 %v451, 110
        %v505 = vpop.permute.xlu0 %504
        %506 = vrot.lane.b32.xlu0 %v453, 110
        %v507 = vpop.permute.xlu0 %506
        %v508 = vsel %vm496, %v501, %v503
        %v509 = vsel %vm496, %v503, %v505
        %v510 = vsel %vm496, %v505, %v507
        %511 = vrot.lane.b32.xlu0 %v414, 109
        %v512 = vpop.permute.xlu0 %511
        %513 = vrot.lane.b32.xlu0 %v422, 109
        %v514 = vpop.permute.xlu0 %513
        %515 = vrot.lane.b32.xlu0 %v421, 109
        %v516 = vpop.permute.xlu0 %515
        %517 = vrot.lane.b32.xlu0 %v423, 109
        %v518 = vpop.permute.xlu0 %517
        %vm519 = vcmask 891904
        %v520 = vsel %vm519, %v512, %v514
        %v521 = vsel %vm519, %v514, %v516
        %v522 = vsel %vm519, %v516, %v518
        %523 = vrot.lane.b32.xlu0 %v444, 109
        %v524 = vpop.permute.xlu0 %523
        %525 = vrot.lane.b32.xlu0 %v452, 109
        %v526 = vpop.permute.xlu0 %525
        %527 = vrot.lane.b32.xlu0 %v451, 109
        %v528 = vpop.permute.xlu0 %527
        %529 = vrot.lane.b32.xlu0 %v453, 109
        %v530 = vpop.permute.xlu0 %529
        %v531 = vsel %vm519, %v524, %v526
        %v532 = vsel %vm519, %v526, %v528
        %v533 = vsel %vm519, %v528, %v530
        %534 = vrot.lane.b32.xlu0 %v414, 108
        %v535 = vpop.permute.xlu0 %534
        %536 = vrot.lane.b32.xlu0 %v422, 108
        %v537 = vpop.permute.xlu0 %536
        %538 = vrot.lane.b32.xlu0 %v421, 108
        %v539 = vpop.permute.xlu0 %538
        %540 = vrot.lane.b32.xlu0 %v423, 108
        %v541 = vpop.permute.xlu0 %540
        %vm542 = vcmask 883712
        %v543 = vsel %vm542, %v535, %v537
        %v544 = vsel %vm542, %v537, %v539
        %v545 = vsel %vm542, %v539, %v541
        %546 = vrot.lane.b32.xlu0 %v444, 108
        %v547 = vpop.permute.xlu0 %546
        %548 = vrot.lane.b32.xlu0 %v452, 108
        %v549 = vpop.permute.xlu0 %548
        %550 = vrot.lane.b32.xlu0 %v451, 108
        %v551 = vpop.permute.xlu0 %550
        %552 = vrot.lane.b32.xlu0 %v453, 108
        %v553 = vpop.permute.xlu0 %552
        %v554 = vsel %vm542, %v547, %v549
        %v555 = vsel %vm542, %v549, %v551
        %v556 = vsel %vm542, %v551, %v553
        %557 = vrot.lane.b32.xlu0 %v414, 92
        %v558 = vpop.permute.xlu0 %557
        %559 = vrot.lane.b32.xlu0 %v422, 92
        %v560 = vpop.permute.xlu0 %559
        %561 = vrot.lane.b32.xlu0 %v421, 92
        %v562 = vpop.permute.xlu0 %561
        %563 = vrot.lane.b32.xlu0 %v423, 92
        %v564 = vpop.permute.xlu0 %563
        %vm565 = vcmask 752640
        %v566 = vsel %vm565, %v558, %v560
        %v567 = vsel %vm565, %v560, %v562
        %v568 = vsel %vm565, %v562, %v564
        %569 = vrot.lane.b32.xlu0 %v444, 92
        %v570 = vpop.permute.xlu0 %569
        %571 = vrot.lane.b32.xlu0 %v452, 92
        %v572 = vpop.permute.xlu0 %571
        %573 = vrot.lane.b32.xlu0 %v451, 92
        %v574 = vpop.permute.xlu0 %573
        %575 = vrot.lane.b32.xlu0 %v453, 92
        %v576 = vpop.permute.xlu0 %575
        %v577 = vsel %vm565, %v570, %v572
        %v578 = vsel %vm565, %v572, %v574
        %v579 = vsel %vm565, %v574, %v576
        %580 = vrot.lane.b32.xlu0 %v414, 91
        %v581 = vpop.permute.xlu0 %580
        %582 = vrot.lane.b32.xlu0 %v422, 91
        %v583 = vpop.permute.xlu0 %582
        %584 = vrot.lane.b32.xlu0 %v421, 91
        %v585 = vpop.permute.xlu0 %584
        %586 = vrot.lane.b32.xlu0 %v423, 91
        %v587 = vpop.permute.xlu0 %586
        %vm588 = vcmask 744448
        %v589 = vsel %vm588, %v581, %v583
        %v590 = vsel %vm588, %v583, %v585
        %v591 = vsel %vm588, %v585, %v587
        %592 = vrot.lane.b32.xlu0 %v444, 91
        %v593 = vpop.permute.xlu0 %592
        %594 = vrot.lane.b32.xlu0 %v452, 91
        %v595 = vpop.permute.xlu0 %594
        %596 = vrot.lane.b32.xlu0 %v451, 91
        %v597 = vpop.permute.xlu0 %596
        %598 = vrot.lane.b32.xlu0 %v453, 91
        %v599 = vpop.permute.xlu0 %598
        %v600 = vsel %vm588, %v593, %v595
        %v601 = vsel %vm588, %v595, %v597
        %v602 = vsel %vm588, %v597, %v599
        %603 = vrot.lane.b32.xlu0 %v414, 90
        %v604 = vpop.permute.xlu0 %603
        %605 = vrot.lane.b32.xlu0 %v422, 90
        %v606 = vpop.permute.xlu0 %605
        %607 = vrot.lane.b32.xlu0 %v421, 90
        %v608 = vpop.permute.xlu0 %607
        %609 = vrot.lane.b32.xlu0 %v423, 90
        %v610 = vpop.permute.xlu0 %609
        %vm611 = vcmask 736256
        %v612 = vsel %vm611, %v604, %v606
        %v613 = vsel %vm611, %v606, %v608
        %v614 = vsel %vm611, %v608, %v610
        %615 = vrot.lane.b32.xlu0 %v444, 90
        %v616 = vpop.permute.xlu0 %615
        %617 = vrot.lane.b32.xlu0 %v452, 90
        %v618 = vpop.permute.xlu0 %617
        %619 = vrot.lane.b32.xlu0 %v451, 90
        %v620 = vpop.permute.xlu0 %619
        %621 = vrot.lane.b32.xlu0 %v453, 90
        %v622 = vpop.permute.xlu0 %621
        %v623 = vsel %vm611, %v616, %v618
        %v624 = vsel %vm611, %v618, %v620
        %v625 = vsel %vm611, %v620, %v622
        %v626 = vrot.slane %v433, 6
        %v627 = vrot.slane %v434, 6
        %v628 = vrot.slane %v435, 6
        %v629 = vrot.slane %v462, 6
        %v630 = vrot.slane %v463, 6
        %v631 = vrot.slane %v464, 6
        %v632 = vrot.slane %v474, 4
        %v633 = vrot.slane %v475, 4
        %v634 = vrot.slane %v476, 4
        %v635 = vrot.slane %v485, 4
        %v636 = vrot.slane %v486, 4
        %v637 = vrot.slane %v487, 4
        %v638 = vrot.slane %v497, 2
        %v639 = vrot.slane %v498, 2
        %v640 = vrot.slane %v499, 2
        %v641 = vrot.slane %v508, 2
        %v642 = vrot.slane %v509, 2
        %v643 = vrot.slane %v510, 2
        %v644 = vrot.slane %v543, 6
        %v645 = vrot.slane %v544, 6
        %v646 = vrot.slane %v545, 6
        %v647 = vrot.slane %v554, 6
        %v648 = vrot.slane %v555, 6
        %v649 = vrot.slane %v556, 6
        %v650 = vrot.slane %v566, 4
        %v651 = vrot.slane %v567, 4
        %v652 = vrot.slane %v568, 4
        %v653 = vrot.slane %v577, 4
        %v654 = vrot.slane %v578, 4
        %v655 = vrot.slane %v579, 4
        %v656 = vrot.slane %v589, 2
        %v657 = vrot.slane %v590, 2
        %v658 = vrot.slane %v591, 2
        %v659 = vrot.slane %v600, 2
        %v660 = vrot.slane %v601, 2
        %v661 = vrot.slane %v602, 2
        %vm662 = vcmask 1041408
        %v665 = vsel %vm662, %v378, %v626
        %v668 = vsel %vm662, %v386, %v627
        %v671 = vsel %vm662, %v385, %v628
        %v674 = vsel %vm662, %v395, %v629
        %v677 = vsel %vm662, %v403, %v630
        %v680 = vsel %vm662, %v402, %v631
        %vm681 = vcmask 1043456
        %v683 = vsel %vm681, %v665, %v632
        %v685 = vsel %vm681, %v668, %v633
        %v687 = vsel %vm681, %v671, %v634
        %v689 = vsel %vm681, %v674, %v635
        %v691 = vsel %vm681, %v677, %v636
        %v693 = vsel %vm681, %v680, %v637
        %vm694 = vcmask 1045504
        %v696 = vsel %vm694, %v683, %v638
        %v699 = vsel %vm694, %v685, %v639
        %v702 = vsel %vm694, %v687, %v640
        %v705 = vsel %vm694, %v689, %v641
        %v708 = vsel %vm694, %v691, %v642
        %v711 = vsel %vm694, %v693, %v643
        %v715 = vsel %vm662, %v520, %v644
        %v718 = vsel %vm662, %v521, %v645
        %v721 = vsel %vm662, %v522, %v646
        %v724 = vsel %vm662, %v531, %v647
        %v727 = vsel %vm662, %v532, %v648
        %v730 = vsel %vm662, %v533, %v649
        %v732 = vsel %vm681, %v715, %v650
        %v734 = vsel %vm681, %v718, %v651
        %v736 = vsel %vm681, %v721, %v652
        %v738 = vsel %vm681, %v724, %v653
        %v740 = vsel %vm681, %v727, %v654
        %v742 = vsel %vm681, %v730, %v655
        %v744 = vsel %vm694, %v732, %v656
        %v747 = vsel %vm694, %v734, %v657
        %v750 = vsel %vm694, %v736, %v658
        %v753 = vsel %vm694, %v738, %v659
        %v756 = vsel %vm694, %v740, %v660
        %v759 = vsel %vm694, %v742, %v661
        %v761 = vld [vmem:[%s2] sm:$0xf]
        %v762 = vld [vmem:[%s3] sm:$0xff]
        %764 = vset.pattern.permute.xlu0 0
        %765 = vperm.xlu0 %764, %v762
        %v766 = vpop.permute.xlu0 %765
        %vm768 = vcmask 293888
        %v770 = vsel %vm768, %v761, 0
        %v773 = vsel %vm662, %v612, 0
        %v776 = vsel %vm662, %v613, 0
        %v779 = vsel %vm662, %v614, 0
        %v782 = vsel %vm662, %v623, 0
        %v785 = vsel %vm662, %v624, 0
        %v788 = vsel %vm662, %v625, 0
        %790 = vmatprep.subr.bf16.mxu0 0
        %791 = vmatpush1.bf16.msra.mxu0 0
        %792 = vmatprep.subr.bf16.mxu0 0
        %793 = vmatpush1.bf16.msra.mxu0 0
        %794 = vmatprep.subr.bf16.mxu0 0
        %795 = vmatpush1.bf16.msra.mxu0 0
        %796 = vmatprep.subr.bf16.mxu0 0
        %797 = vmatpush1.bf16.msra.mxu0 0
        %798 = vmatprep.subr.bf16.mxu0 0
        %799 = vmatpush1.bf16.msra.mxu0 0
        %800 = vmatprep.subr.bf16.mxu0 %v776
        %801 = vmatpush1.bf16.msra.mxu0 %v773
        %802 = vmatprep.subr.bf16.mxu0 %v747
        %803 = vmatpush1.bf16.msra.mxu0 %v744
        %804 = vmatprep.subr.bf16.mxu0 %v699
        %805 = vmatpush1.bf16.msra.mxu0 %v696
        %806 = vmatprep.subr.bf16.mxu0 0
        %807 = vmatpush2.bf16.msra.mxu0 0
        %808 = vmatprep.subr.bf16.mxu0 0
        %809 = vmatpush2.bf16.msra.mxu0 0
        %810 = vmatprep.subr.bf16.mxu0 0
        %811 = vmatpush2.bf16.msra.mxu0 0
        %812 = vmatprep.subr.bf16.mxu0 0
        %813 = vmatpush2.bf16.msra.mxu0 0
        %814 = vmatprep.subr.bf16.mxu0 0
        %815 = vmatpush2.bf16.msra.mxu0 0
        %816 = vmatprep.subr.bf16.mxu0 0
        %817 = vmatpush2.bf16.msra.mxu0 0
        %818 = vmatprep.subr.bf16.mxu0 0
        %819 = vmatpush2.bf16.msra.mxu0 0
        %820 = vmatprep.subr.bf16.mxu0 0
        %821 = vmatpush2.bf16.msra.mxu0 0
        %822 = vmatprep.mubr.bf16.mxu0 0
        %823 = vmatmul.mubr.bf16.gmra.mxu0 %v770
        %v824 = vpop.f32.mrf.mxu0
        %v825 = vadd.f32 %v766, %v824
        %v826 = vpop.f32.mrf.mxu0
        %v827 = vadd.f32 %v766, %v826
        %v828 = vpop.f32.mrf.mxu0
        %v829 = vpop.f32.mrf.mxu0
        %830 = vdwg.mxu0
        %831 = vmatprep.subr.bf16.mxu0 0
        %832 = vmatpush1.bf16.msra.mxu0 0
        %833 = vmatprep.subr.bf16.mxu0 0
        %834 = vmatpush1.bf16.msra.mxu0 0
        %835 = vmatprep.subr.bf16.mxu0 0
        %836 = vmatpush1.bf16.msra.mxu0 0
        %837 = vmatprep.subr.bf16.mxu0 0
        %838 = vmatpush1.bf16.msra.mxu0 0
        %839 = vmatprep.subr.bf16.mxu0 0
        %840 = vmatpush1.bf16.msra.mxu0 0
        %841 = vmatprep.subr.bf16.mxu0 %v782
        %842 = vmatpush1.bf16.msra.mxu0 %v779
        %843 = vmatprep.subr.bf16.mxu0 %v753
        %844 = vmatpush1.bf16.msra.mxu0 %v750
        %845 = vmatprep.subr.bf16.mxu0 %v705
        %846 = vmatpush1.bf16.msra.mxu0 %v702
        %847 = vmatprep.subr.bf16.mxu0 0
        %848 = vmatpush2.bf16.msra.mxu0 0
        %849 = vmatprep.subr.bf16.mxu0 0
        %850 = vmatpush2.bf16.msra.mxu0 0
        %851 = vmatprep.subr.bf16.mxu0 0
        %852 = vmatpush2.bf16.msra.mxu0 0
        %853 = vmatprep.subr.bf16.mxu0 0
        %854 = vmatpush2.bf16.msra.mxu0 0
        %855 = vmatprep.subr.bf16.mxu0 0
        %856 = vmatpush2.bf16.msra.mxu0 0
        %857 = vmatprep.subr.bf16.mxu0 0
        %858 = vmatpush2.bf16.msra.mxu0 0
        %859 = vmatprep.subr.bf16.mxu0 0
        %860 = vmatpush2.bf16.msra.mxu0 0
        %861 = vmatprep.subr.bf16.mxu0 0
        %862 = vmatpush2.bf16.msra.mxu0 0
        %863 = vmatprep.mubr.bf16.mxu0 0
        %864 = vmatmul.mubr.bf16.gmra.mxu0 %v770
        %v865 = vpop.f32.mrf.mxu0
        %v866 = vadd.f32 %v766, %v865
        %v867 = vpop.f32.mrf.mxu0
        %v868 = vadd.f32 %v766, %v867
        %v869 = vpop.f32.mrf.mxu0
        %v870 = vpop.f32.mrf.mxu0
        %871 = vdwg.mxu0
        %872 = vmatprep.subr.bf16.mxu0 0
        %873 = vmatpush1.bf16.msra.mxu0 0
        %874 = vmatprep.subr.bf16.mxu0 0
        %875 = vmatpush1.bf16.msra.mxu0 0
        %876 = vmatprep.subr.bf16.mxu0 0
        %877 = vmatpush1.bf16.msra.mxu0 0
        %878 = vmatprep.subr.bf16.mxu0 0
        %879 = vmatpush1.bf16.msra.mxu0 0
        %880 = vmatprep.subr.bf16.mxu0 0
        %881 = vmatpush1.bf16.msra.mxu0 0
        %882 = vmatprep.subr.bf16.mxu0 %v788
        %883 = vmatpush1.bf16.msra.mxu0 %v785
        %884 = vmatprep.subr.bf16.mxu0 %v759
        %885 = vmatpush1.bf16.msra.mxu0 %v756
        %886 = vmatprep.subr.bf16.mxu0 %v711
        %887 = vmatpush1.bf16.msra.mxu0 %v708
        %888 = vmatprep.subr.bf16.mxu0 0
        %889 = vmatpush2.bf16.msra.mxu0 0
        %890 = vmatprep.subr.bf16.mxu0 0
        %891 = vmatpush2.bf16.msra.mxu0 0
        %892 = vmatprep.subr.bf16.mxu0 0
        %893 = vmatpush2.bf16.msra.mxu0 0
        %894 = vmatprep.subr.bf16.mxu0 0
        %895 = vmatpush2.bf16.msra.mxu0 0
        %896 = vmatprep.subr.bf16.mxu0 0
        %897 = vmatpush2.bf16.msra.mxu0 0
        %898 = vmatprep.subr.bf16.mxu0 0
        %899 = vmatpush2.bf16.msra.mxu0 0
        %900 = vmatprep.subr.bf16.mxu0 0
        %901 = vmatpush2.bf16.msra.mxu0 0
        %902 = vmatprep.subr.bf16.mxu0 0
        %903 = vmatpush2.bf16.msra.mxu0 0
        %904 = vmatprep.mubr.bf16.mxu0 0
        %905 = vmatmul.mubr.bf16.gmra.mxu0 %v770
        %v906 = vpop.f32.mrf.mxu0
        %v907 = vadd.f32 %v766, %v906
        %v908 = vpop.f32.mrf.mxu0
        %v909 = vadd.f32 %v766, %v908
        %v910 = vpop.f32.mrf.mxu0
        %v911 = vpop.f32.mrf.mxu0
        %912 = vdwg.mxu0
        %v913 = vmax.f32 %v825, 0.0
        %v914 = vmax.f32 %v827, 0.0
        %v915 = vmax.f32 %v866, 0.0
        %v916 = vmax.f32 %v868, 0.0
        %v917 = vmax.f32 %v907, 0.0
        %v918 = vmax.f32 %v909, 0.0
        %v919 = vld [vmem:[%s1] sm:$0xff]
        %v920 = vld [vmem:[%s1 + $0x8] sm:$0xff]
        %v921 = vld [vmem:[%s1 + $0x10] sm:$0xff]
        %v922 = vld [vmem:[%s1 + $0x18] sm:$0xff]
        %v923 = vld [vmem:[%s1 + $0x20] sm:$0xff]
        %v924 = vld [vmem:[%s1 + $0x28] sm:$0xff]
        %v925 = vld [vmem:[%s1 + $0x30] sm:$0xff]
        %v926 = vld [vmem:[%s1 + $0x38] sm:$0xff]
        %v927 = vld [vmem:[%s1 + $0x40] sm:$0xff]
        %v928 = vld [vmem:[%s1 + $0x48] sm:$0xff]
        %v929 = vld [vmem:[%s1 + $0x50] sm:$0xff]
        %v930 = vld [vmem:[%s1 + $0x58] sm:$0xff]
        %v931 = vld [vmem:[%s1 + $0x60] sm:$0xff]
        %v932 = vld [vmem:[%s1 + $0x68] sm:$0xff]
        %v933 = vld [vmem:[%s1 + $0x70] sm:$0xff]
        %v934 = vld [vmem:[%s1 + $0x78] sm:$0xff]
        %v935 = vld [vmem:[%s1 + $0x80] sm:$0xff]
        %v936 = vld [vmem:[%s1 + $0x88] sm:$0xff]
        %v937 = vld [vmem:[%s1 + $0x90] sm:$0xff]
        %v938 = vld [vmem:[%s1 + $0x98] sm:$0xff]
        %v939 = vld [vmem:[%s1 + $0xa0] sm:$0xff]
        %v940 = vld [vmem:[%s1 + $0xa8] sm:$0xff]
        %v941 = vld [vmem:[%s1 + $0xb0] sm:$0xff]
        %v942 = vld [vmem:[%s1 + $0xb8] sm:$0xff]
        %v943 = vld [vmem:[%s1 + $0xc0] sm:$0xff]
        %v944 = vld [vmem:[%s1 + $0xc8] sm:$0xff]
        %v945 = vld [vmem:[%s1 + $0xd0] sm:$0xff]
        %v946 = vld [vmem:[%s1 + $0xd8] sm:$0xff]
        %v947 = vld [vmem:[%s1 + $0xe0] sm:$0xff]
        %v948 = vld [vmem:[%s1 + $0xe8] sm:$0xff]
        %v949 = vld [vmem:[%s1 + $0xf0] sm:$0xff]
        %v950 = vld [vmem:[%s1 + $0xf8] sm:$0xff]
        %v951 = vld [vmem:[%s1 + $0x100] sm:$0xff]
        %v952 = vld [vmem:[%s1 + $0x108] sm:$0xff]
        %v953 = vld [vmem:[%s1 + $0x110] sm:$0xff]
        %v954 = vld [vmem:[%s1 + $0x118] sm:$0xff]
        %v955 = vld [vmem:[%s1 + $0x120] sm:$0xff]
        %v956 = vld [vmem:[%s1 + $0x128] sm:$0xff]
        %v957 = vld [vmem:[%s1 + $0x130] sm:$0xff]
        %v958 = vld [vmem:[%s1 + $0x138] sm:$0xff]
        %v959 = vld [vmem:[%s1 + $0x140] sm:$0xff]
        %v960 = vld [vmem:[%s1 + $0x148] sm:$0xff]
        %v961 = vld [vmem:[%s1 + $0x150] sm:$0xff]
        %v962 = vld [vmem:[%s1 + $0x158] sm:$0xff]
        %v963 = vld [vmem:[%s1 + $0x160] sm:$0xff]
        %v964 = vld [vmem:[%s1 + $0x168] sm:$0xff]
        %v965 = vld [vmem:[%s1 + $0x170] sm:$0xff]
        %v966 = vld [vmem:[%s1 + $0x178] sm:$0xff]
        %v967 = vld [vmem:[%s1 + $0x180] sm:$0xff]
        %v968 = vld [vmem:[%s1 + $0x188] sm:$0xff]
        %v969 = vld [vmem:[%s1 + $0x190] sm:$0xff]
        %v970 = vld [vmem:[%s1 + $0x198] sm:$0xff]
        %v971 = vld [vmem:[%s1 + $0x1a0] sm:$0xff]
        %v972 = vld [vmem:[%s1 + $0x1a8] sm:$0xff]
        %v973 = vld [vmem:[%s1 + $0x1b0] sm:$0xff]
        %v974 = vld [vmem:[%s1 + $0x1b8] sm:$0xff]
        %v975 = vld [vmem:[%s1 + $0x1c0] sm:$0xff]
        %v976 = vld [vmem:[%s1 + $0x1c8] sm:$0xff]
        %v977 = vld [vmem:[%s1 + $0x1d0] sm:$0xff]
        %v978 = vld [vmem:[%s1 + $0x1d8] sm:$0xff]
        %v979 = vld [vmem:[%s1 + $0x1e0] sm:$0xff]
        %v980 = vld [vmem:[%s1 + $0x1e8] sm:$0xff]
        %v981 = vld [vmem:[%s1 + $0x1f0] sm:$0xff]
        %v982 = vld [vmem:[%s1 + $0x1f8] sm:$0xff]
        %v983 = vld [vmem:[%s1 + $0x200] sm:$0xff]
        %v984 = vld [vmem:[%s1 + $0x208] sm:$0xff]
        %v985 = vld [vmem:[%s1 + $0x210] sm:$0xff]
        %v986 = vld [vmem:[%s1 + $0x218] sm:$0xff]
        %v987 = vld [vmem:[%s1 + $0x220] sm:$0xff]
        %v988 = vld [vmem:[%s1 + $0x228] sm:$0xff]
        %v989 = vld [vmem:[%s1 + $0x230] sm:$0xff]
        %v990 = vld [vmem:[%s1 + $0x238] sm:$0xff]
        %v991 = vld [vmem:[%s1 + $0x240] sm:$0xff]
        %v992 = vld [vmem:[%s1 + $0x248] sm:$0xff]
        %v993 = vld [vmem:[%s1 + $0x250] sm:$0xff]
        %v994 = vld [vmem:[%s1 + $0x258] sm:$0xff]
        %v995 = vld [vmem:[%s1 + $0x260] sm:$0xff]
        %v996 = vld [vmem:[%s1 + $0x268] sm:$0xff]
        %v997 = vld [vmem:[%s1 + $0x270] sm:$0xff]
        %v998 = vld [vmem:[%s1 + $0x278] sm:$0xff]
        %v999 = vld [vmem:[%s1 + $0x280] sm:$0xff]
        %v1000 = vld [vmem:[%s1 + $0x288] sm:$0xff]
        %v1001 = vld [vmem:[%s1 + $0x290] sm:$0xff]
        %v1002 = vld [vmem:[%s1 + $0x298] sm:$0xff]
        %v1003 = vld [vmem:[%s1 + $0x2a0] sm:$0xff]
        %v1004 = vld [vmem:[%s1 + $0x2a8] sm:$0xff]
        %v1005 = vld [vmem:[%s1 + $0x2b0] sm:$0xff]
        %v1006 = vld [vmem:[%s1 + $0x2b8] sm:$0xff]
        %v1007 = vld [vmem:[%s1 + $0x2c0] sm:$0xff]
        %v1008 = vld [vmem:[%s1 + $0x2c8] sm:$0xff]
        %v1009 = vld [vmem:[%s1 + $0x2d0] sm:$0xff]
        %v1010 = vld [vmem:[%s1 + $0x2d8] sm:$0xff]
        %v1011 = vld [vmem:[%s1 + $0x2e0] sm:$0xff]
        %v1012 = vld [vmem:[%s1 + $0x2e8] sm:$0xff]
        %v1013 = vld [vmem:[%s1 + $0x2f0] sm:$0xff]
        %v1014 = vld [vmem:[%s1 + $0x2f8] sm:$0xff]
        %1015 = vmatprep.subr.mxu0 0.0
        %1016 = vmatpush1.msra.mxu0 %v934
        %1017 = vmatprep.subr.mxu0 0.0
        %1018 = vmatpush1.msra.mxu0 %v933
        %1019 = vmatprep.subr.mxu0 0.0
        %1020 = vmatpush1.msra.mxu0 %v932
        %1021 = vmatprep.subr.mxu0 0.0
        %1022 = vmatpush1.msra.mxu0 %v931
        %1023 = vmatprep.subr.mxu0 0.0
        %1024 = vmatpush1.msra.mxu0 %v930
        %1025 = vmatprep.subr.mxu0 0.0
        %1026 = vmatpush1.msra.mxu0 %v929
        %1027 = vmatprep.subr.mxu0 0.0
        %1028 = vmatpush1.msra.mxu0 %v928
        %1029 = vmatprep.subr.mxu0 0.0
        %1030 = vmatpush1.msra.mxu0 %v927
        %1031 = vmatprep.subr.mxu0 0.0
        %1032 = vmatpush1.msra.mxu0 %v926
        %1033 = vmatprep.subr.mxu0 0.0
        %1034 = vmatpush1.msra.mxu0 %v925
        %1035 = vmatprep.subr.mxu0 0.0
        %1036 = vmatpush1.msra.mxu0 %v924
        %1037 = vmatprep.subr.mxu0 0.0
        %1038 = vmatpush1.msra.mxu0 %v923
        %1039 = vmatprep.subr.mxu0 0.0
        %1040 = vmatpush1.msra.mxu0 %v922
        %1041 = vmatprep.subr.mxu0 0.0
        %1042 = vmatpush1.msra.mxu0 %v921
        %1043 = vmatprep.subr.mxu0 0.0
        %1044 = vmatpush1.msra.mxu0 %v920
        %1045 = vmatprep.subr.mxu0 0.0
        %1046 = vmatpush1.msra.mxu0 %v919
        %1047 = vmatprep.subr.mxu0 0.0
        %1048 = vmatpush2.msra.mxu0 %v950
        %1049 = vmatprep.subr.mxu0 0.0
        %1050 = vmatpush2.msra.mxu0 %v949
        %1051 = vmatprep.subr.mxu0 0.0
        %1052 = vmatpush2.msra.mxu0 %v948
        %1053 = vmatprep.subr.mxu0 0.0
        %1054 = vmatpush2.msra.mxu0 %v947
        %1055 = vmatprep.subr.mxu0 0.0
        %1056 = vmatpush2.msra.mxu0 %v946
        %1057 = vmatprep.subr.mxu0 0.0
        %1058 = vmatpush2.msra.mxu0 %v945
        %1059 = vmatprep.subr.mxu0 0.0
        %1060 = vmatpush2.msra.mxu0 %v944
        %1061 = vmatprep.subr.mxu0 0.0
        %1062 = vmatpush2.msra.mxu0 %v943
        %1063 = vmatprep.subr.mxu0 0.0
        %1064 = vmatpush2.msra.mxu0 %v942
        %1065 = vmatprep.subr.mxu0 0.0
        %1066 = vmatpush2.msra.mxu0 %v941
        %1067 = vmatprep.subr.mxu0 0.0
        %1068 = vmatpush2.msra.mxu0 %v940
        %1069 = vmatprep.subr.mxu0 0.0
        %1070 = vmatpush2.msra.mxu0 %v939
        %1071 = vmatprep.subr.mxu0 0.0
        %1072 = vmatpush2.msra.mxu0 %v938
        %1073 = vmatprep.subr.mxu0 0.0
        %1074 = vmatpush2.msra.mxu0 %v937
        %1075 = vmatprep.subr.mxu0 0.0
        %1076 = vmatpush2.msra.mxu0 %v936
        %1077 = vmatprep.subr.mxu0 0.0
        %1078 = vmatpush2.msra.mxu0 %v935
        %1079 = vmatprep.mubr.f32.mxu0 %v914
        %1080 = vmatmul.mubr.f32.gmra.mxu0 %v913
        %v1081 = vpop.f32.mrf.mxu0
        %v1082 = vadd.f32 0.0, %v1081
        %v1083 = vpop.f32.mrf.mxu0
        %1084 = vdwg.mxu0
        %1085 = vmatprep.subr.mxu0 0.0
        %1086 = vmatpush1.msra.mxu0 %v966
        %1087 = vmatprep.subr.mxu0 0.0
        %1088 = vmatpush1.msra.mxu0 %v965
        %1089 = vmatprep.subr.mxu0 0.0
        %1090 = vmatpush1.msra.mxu0 %v964
        %1091 = vmatprep.subr.mxu0 0.0
        %1092 = vmatpush1.msra.mxu0 %v963
        %1093 = vmatprep.subr.mxu0 0.0
        %1094 = vmatpush1.msra.mxu0 %v962
        %1095 = vmatprep.subr.mxu0 0.0
        %1096 = vmatpush1.msra.mxu0 %v961
        %1097 = vmatprep.subr.mxu0 0.0
        %1098 = vmatpush1.msra.mxu0 %v960
        %1099 = vmatprep.subr.mxu0 0.0
        %1100 = vmatpush1.msra.mxu0 %v959
        %1101 = vmatprep.subr.mxu0 0.0
        %1102 = vmatpush1.msra.mxu0 %v958
        %1103 = vmatprep.subr.mxu0 0.0
        %1104 = vmatpush1.msra.mxu0 %v957
        %1105 = vmatprep.subr.mxu0 0.0
        %1106 = vmatpush1.msra.mxu0 %v956
        %1107 = vmatprep.subr.mxu0 0.0
        %1108 = vmatpush1.msra.mxu0 %v955
        %1109 = vmatprep.subr.mxu0 0.0
        %1110 = vmatpush1.msra.mxu0 %v954
        %1111 = vmatprep.subr.mxu0 0.0
        %1112 = vmatpush1.msra.mxu0 %v953
        %1113 = vmatprep.subr.mxu0 0.0
        %1114 = vmatpush1.msra.mxu0 %v952
        %1115 = vmatprep.subr.mxu0 0.0
        %1116 = vmatpush1.msra.mxu0 %v951
        %1117 = vmatprep.subr.mxu0 0.0
        %1118 = vmatpush2.msra.mxu0 %v982
        %1119 = vmatprep.subr.mxu0 0.0
        %1120 = vmatpush2.msra.mxu0 %v981
        %1121 = vmatprep.subr.mxu0 0.0
        %1122 = vmatpush2.msra.mxu0 %v980
        %1123 = vmatprep.subr.mxu0 0.0
        %1124 = vmatpush2.msra.mxu0 %v979
        %1125 = vmatprep.subr.mxu0 0.0
        %1126 = vmatpush2.msra.mxu0 %v978
        %1127 = vmatprep.subr.mxu0 0.0
        %1128 = vmatpush2.msra.mxu0 %v977
        %1129 = vmatprep.subr.mxu0 0.0
        %1130 = vmatpush2.msra.mxu0 %v976
        %1131 = vmatprep.subr.mxu0 0.0
        %1132 = vmatpush2.msra.mxu0 %v975
        %1133 = vmatprep.subr.mxu0 0.0
        %1134 = vmatpush2.msra.mxu0 %v974
        %1135 = vmatprep.subr.mxu0 0.0
        %1136 = vmatpush2.msra.mxu0 %v973
        %1137 = vmatprep.subr.mxu0 0.0
        %1138 = vmatpush2.msra.mxu0 %v972
        %1139 = vmatprep.subr.mxu0 0.0
        %1140 = vmatpush2.msra.mxu0 %v971
        %1141 = vmatprep.subr.mxu0 0.0
        %1142 = vmatpush2.msra.mxu0 %v970
        %1143 = vmatprep.subr.mxu0 0.0
        %1144 = vmatpush2.msra.mxu0 %v969
        %1145 = vmatprep.subr.mxu0 0.0
        %1146 = vmatpush2.msra.mxu0 %v968
        %1147 = vmatprep.subr.mxu0 0.0
        %1148 = vmatpush2.msra.mxu0 %v967
        %1149 = vmatprep.mubr.f32.mxu0 %v916
        %1150 = vmatmul.mubr.f32.gmra.mxu0 %v915
        %v1151 = vpop.f32.mrf.mxu0
        %v1152 = vadd.f32 %v1082, %v1151
        %v1153 = vpop.f32.mrf.mxu0
        %1154 = vdwg.mxu0
        %1155 = vmatprep.subr.mxu0 0.0
        %1156 = vmatpush1.msra.mxu0 %v998
        %1157 = vmatprep.subr.mxu0 0.0
        %1158 = vmatpush1.msra.mxu0 %v997
        %1159 = vmatprep.subr.mxu0 0.0
        %1160 = vmatpush1.msra.mxu0 %v996
        %1161 = vmatprep.subr.mxu0 0.0
        %1162 = vmatpush1.msra.mxu0 %v995
        %1163 = vmatprep.subr.mxu0 0.0
        %1164 = vmatpush1.msra.mxu0 %v994
        %1165 = vmatprep.subr.mxu0 0.0
        %1166 = vmatpush1.msra.mxu0 %v993
        %1167 = vmatprep.subr.mxu0 0.0
        %1168 = vmatpush1.msra.mxu0 %v992
        %1169 = vmatprep.subr.mxu0 0.0
        %1170 = vmatpush1.msra.mxu0 %v991
        %1171 = vmatprep.subr.mxu0 0.0
        %1172 = vmatpush1.msra.mxu0 %v990
        %1173 = vmatprep.subr.mxu0 0.0
        %1174 = vmatpush1.msra.mxu0 %v989
        %1175 = vmatprep.subr.mxu0 0.0
        %1176 = vmatpush1.msra.mxu0 %v988
        %1177 = vmatprep.subr.mxu0 0.0
        %1178 = vmatpush1.msra.mxu0 %v987
        %1179 = vmatprep.subr.mxu0 0.0
        %1180 = vmatpush1.msra.mxu0 %v986
        %1181 = vmatprep.subr.mxu0 0.0
        %1182 = vmatpush1.msra.mxu0 %v985
        %1183 = vmatprep.subr.mxu0 0.0
        %1184 = vmatpush1.msra.mxu0 %v984
        %1185 = vmatprep.subr.mxu0 0.0
        %1186 = vmatpush1.msra.mxu0 %v983
        %1187 = vmatprep.subr.mxu0 0.0
        %1188 = vmatpush2.msra.mxu0 %v1014
        %1189 = vmatprep.subr.mxu0 0.0
        %1190 = vmatpush2.msra.mxu0 %v1013
        %1191 = vmatprep.subr.mxu0 0.0
        %1192 = vmatpush2.msra.mxu0 %v1012
        %1193 = vmatprep.subr.mxu0 0.0
        %1194 = vmatpush2.msra.mxu0 %v1011
        %1195 = vmatprep.subr.mxu0 0.0
        %1196 = vmatpush2.msra.mxu0 %v1010
        %1197 = vmatprep.subr.mxu0 0.0
        %1198 = vmatpush2.msra.mxu0 %v1009
        %1199 = vmatprep.subr.mxu0 0.0
        %1200 = vmatpush2.msra.mxu0 %v1008
        %1201 = vmatprep.subr.mxu0 0.0
        %1202 = vmatpush2.msra.mxu0 %v1007
        %1203 = vmatprep.subr.mxu0 0.0
        %1204 = vmatpush2.msra.mxu0 %v1006
        %1205 = vmatprep.subr.mxu0 0.0
        %1206 = vmatpush2.msra.mxu0 %v1005
        %1207 = vmatprep.subr.mxu0 0.0
        %1208 = vmatpush2.msra.mxu0 %v1004
        %1209 = vmatprep.subr.mxu0 0.0
        %1210 = vmatpush2.msra.mxu0 %v1003
        %1211 = vmatprep.subr.mxu0 0.0
        %1212 = vmatpush2.msra.mxu0 %v1002
        %1213 = vmatprep.subr.mxu0 0.0
        %1214 = vmatpush2.msra.mxu0 %v1001
        %1215 = vmatprep.subr.mxu0 0.0
        %1216 = vmatpush2.msra.mxu0 %v1000
        %1217 = vmatprep.subr.mxu0 0.0
        %1218 = vmatpush2.msra.mxu0 %v999
        %1219 = vmatprep.mubr.f32.mxu0 %v918
        %1220 = vmatmul.mubr.f32.gmra.mxu0 %v917
        %v1221 = vpop.f32.mrf.mxu0
        %v1222 = vadd.f32 %v1152, %v1221
        %v1223 = vpop.f32.mrf.mxu0
        %1224 = vdwg.mxu0
        %v1225 = vld [vmem:[%s4] sm:$0xf]
        %v1226 = vld [vmem:[%s5] sm:$0xf]
        %1228 = vset.pattern.permute.xlu0 0
        %1229 = vperm.xlu0 %1228, %v1226
        %v1230 = vpop.permute.xlu0 %1229
        %vm1232 = vcmask 64512
        %v1234 = vsel %vm1232, %v1225, 0
        %1236 = vmatprep.subr.mxu0 0.0
        %1237 = vmatpush1.msra.mxu0 0.0
        %1238 = vmatprep.subr.mxu0 0.0
        %1239 = vmatpush1.msra.mxu0 0.0
        %1240 = vmatprep.subr.mxu0 0.0
        %1241 = vmatpush1.msra.mxu0 0.0
        %1242 = vmatprep.subr.mxu0 0.0
        %1243 = vmatpush1.msra.mxu0 0.0
        %1244 = vmatprep.subr.mxu0 0.0
        %1245 = vmatpush1.msra.mxu0 0.0
        %1246 = vmatprep.subr.mxu0 0.0
        %1247 = vmatpush1.msra.mxu0 0.0
        %1248 = vmatprep.subr.mxu0 0.0
        %1249 = vmatpush1.msra.mxu0 0.0
        %1250 = vmatprep.subr.mxu0 0.0
        %1251 = vmatpush1.msra.mxu0 0.0
        %1252 = vmatprep.subr.mxu0 0.0
        %1253 = vmatpush1.msra.mxu0 0.0
        %1254 = vmatprep.subr.mxu0 0.0
        %1255 = vmatpush1.msra.mxu0 0.0
        %1256 = vmatprep.subr.mxu0 0.0
        %1257 = vmatpush1.msra.mxu0 0.0
        %1258 = vmatprep.subr.mxu0 0.0
        %1259 = vmatpush1.msra.mxu0 0.0
        %1260 = vmatprep.subr.mxu0 0.0
        %1261 = vmatpush1.msra.mxu0 0.0
        %1262 = vmatprep.subr.mxu0 0.0
        %1263 = vmatpush1.msra.mxu0 0.0
        %1264 = vmatprep.subr.mxu0 0.0
        %1265 = vmatpush1.msra.mxu0 0.0
        %1266 = vmatprep.subr.mxu0 0.0
        %1267 = vmatpush1.msra.mxu0 %v1222
        %1268 = vmatprep.subr.mxu0 0.0
        %1269 = vmatpush2.msra.mxu0 0.0
        %1270 = vmatprep.subr.mxu0 0.0
        %1271 = vmatpush2.msra.mxu0 0.0
        %1272 = vmatprep.subr.mxu0 0.0
        %1273 = vmatpush2.msra.mxu0 0.0
        %1274 = vmatprep.subr.mxu0 0.0
        %1275 = vmatpush2.msra.mxu0 0.0
        %1276 = vmatprep.subr.mxu0 0.0
        %1277 = vmatpush2.msra.mxu0 0.0
        %1278 = vmatprep.subr.mxu0 0.0
        %1279 = vmatpush2.msra.mxu0 0.0
        %1280 = vmatprep.subr.mxu0 0.0
        %1281 = vmatpush2.msra.mxu0 0.0
        %1282 = vmatprep.subr.mxu0 0.0
        %1283 = vmatpush2.msra.mxu0 0.0
        %1284 = vmatprep.subr.mxu0 0.0
        %1285 = vmatpush2.msra.mxu0 0.0
        %1286 = vmatprep.subr.mxu0 0.0
        %1287 = vmatpush2.msra.mxu0 0.0
        %1288 = vmatprep.subr.mxu0 0.0
        %1289 = vmatpush2.msra.mxu0 0.0
        %1290 = vmatprep.subr.mxu0 0.0
        %1291 = vmatpush2.msra.mxu0 0.0
        %1292 = vmatprep.subr.mxu0 0.0
        %1293 = vmatpush2.msra.mxu0 0.0
        %1294 = vmatprep.subr.mxu0 0.0
        %1295 = vmatpush2.msra.mxu0 0.0
        %1296 = vmatprep.subr.mxu0 0.0
        %1297 = vmatpush2.msra.mxu0 0.0
        %1298 = vmatprep.subr.mxu0 0.0
        %1299 = vmatpush2.msra.mxu0 0.0
        %1300 = vmatprep.mubr.f32.mxu0 0.0
        %1301 = vmatmul.mubr.f32.gmra.mxu0 %v1234
        %v1302 = vpop.f32.mrf.mxu0
        %v1303 = vadd.f32 %v1230, %v1302
        %v1304 = vpop.f32.mrf.mxu0
        %1305 = vdwg.mxu0
        %v1306 = vmax.f32 %v1303, 0.0
        %v1307 = vld [vmem:[%s6] sm:$0xff]
        %v1308 = vld [vmem:[%s7] sm:$0xff]
        %1310 = vset.pattern.permute.xlu0 0
        %1311 = vperm.xlu0 %1310, %v1308
        %v1312 = vpop.permute.xlu0 %1311
        %vm1314 = vcmask 31744
        %v1316 = vsel %vm1314, %v1307, 0
        %v1319 = vsel %vm681, %v1306, 0
        %1321 = vmatprep.subr.mxu0 0.0
        %1322 = vmatpush1.msra.mxu0 0.0
        %1323 = vmatprep.subr.mxu0 0.0
        %1324 = vmatpush1.msra.mxu0 0.0
        %1325 = vmatprep.subr.mxu0 0.0
        %1326 = vmatpush1.msra.mxu0 0.0
        %1327 = vmatprep.subr.mxu0 0.0
        %1328 = vmatpush1.msra.mxu0 0.0
        %1329 = vmatprep.subr.mxu0 0.0
        %1330 = vmatpush1.msra.mxu0 0.0
        %1331 = vmatprep.subr.mxu0 0.0
        %1332 = vmatpush1.msra.mxu0 0.0
        %1333 = vmatprep.subr.mxu0 0.0
        %1334 = vmatpush1.msra.mxu0 0.0
        %1335 = vmatprep.subr.mxu0 0.0
        %1336 = vmatpush1.msra.mxu0 0.0
        %1337 = vmatprep.subr.mxu0 0.0
        %1338 = vmatpush1.msra.mxu0 0.0
        %1339 = vmatprep.subr.mxu0 0.0
        %1340 = vmatpush1.msra.mxu0 0.0
        %1341 = vmatprep.subr.mxu0 0.0
        %1342 = vmatpush1.msra.mxu0 0.0
        %1343 = vmatprep.subr.mxu0 0.0
        %1344 = vmatpush1.msra.mxu0 0.0
        %1345 = vmatprep.subr.mxu0 0.0
        %1346 = vmatpush1.msra.mxu0 0.0
        %1347 = vmatprep.subr.mxu0 0.0
        %1348 = vmatpush1.msra.mxu0 0.0
        %1349 = vmatprep.subr.mxu0 0.0
        %1350 = vmatpush1.msra.mxu0 0.0
        %1351 = vmatprep.subr.mxu0 0.0
        %1352 = vmatpush1.msra.mxu0 %v1319
        %1353 = vmatprep.subr.mxu0 0.0
        %1354 = vmatpush2.msra.mxu0 0.0
        %1355 = vmatprep.subr.mxu0 0.0
        %1356 = vmatpush2.msra.mxu0 0.0
        %1357 = vmatprep.subr.mxu0 0.0
        %1358 = vmatpush2.msra.mxu0 0.0
        %1359 = vmatprep.subr.mxu0 0.0
        %1360 = vmatpush2.msra.mxu0 0.0
        %1361 = vmatprep.subr.mxu0 0.0
        %1362 = vmatpush2.msra.mxu0 0.0
        %1363 = vmatprep.subr.mxu0 0.0
        %1364 = vmatpush2.msra.mxu0 0.0
        %1365 = vmatprep.subr.mxu0 0.0
        %1366 = vmatpush2.msra.mxu0 0.0
        %1367 = vmatprep.subr.mxu0 0.0
        %1368 = vmatpush2.msra.mxu0 0.0
        %1369 = vmatprep.subr.mxu0 0.0
        %1370 = vmatpush2.msra.mxu0 0.0
        %1371 = vmatprep.subr.mxu0 0.0
        %1372 = vmatpush2.msra.mxu0 0.0
        %1373 = vmatprep.subr.mxu0 0.0
        %1374 = vmatpush2.msra.mxu0 0.0
        %1375 = vmatprep.subr.mxu0 0.0
        %1376 = vmatpush2.msra.mxu0 0.0
        %1377 = vmatprep.subr.mxu0 0.0
        %1378 = vmatpush2.msra.mxu0 0.0
        %1379 = vmatprep.subr.mxu0 0.0
        %1380 = vmatpush2.msra.mxu0 0.0
        %1381 = vmatprep.subr.mxu0 0.0
        %1382 = vmatpush2.msra.mxu0 0.0
        %1383 = vmatprep.subr.mxu0 0.0
        %1384 = vmatpush2.msra.mxu0 0.0
        %1385 = vmatprep.mubr.f32.mxu0 0.0
        %1386 = vmatmul.mubr.f32.gmra.mxu0 %v1316
        %v1387 = vpop.f32.mrf.mxu0
        %v1388 = vadd.f32 %v1312, %v1387
        %v1389 = vpop.f32.mrf.mxu0
        %1390 = vdwg.mxu0
        %v1391 = vxor.u32 %v1388, 2147483648
        %v1392 = vmul.f32 %v1391, 1.442695
        %v1393 = vpow.pop %v1392
        %v1394 = vadd.f32 %v1393, 1.0
        %v1395 = vrcp.pop %v1394
        %v1396 = vmul.f32 1.0, %v1395
        %v1397 = vld [vmem:[%s8] sm:$0x1]
        %v1398 = vld [vmem:[#allocation2] sm:$0x1]
        %1400 = vset.pattern.permute.xlu0 0
        %1401 = vperm.xlu0 %1400, %v1398
        %v1402 = vpop.permute.xlu0 %1401
        %v1404 = vlaneseq
        %v1405 = vshrl.u32 %v1404, 7
        %v1406 = vsub.s32 0, %v1405
        %v1407 = vrot.slane %v1402, %v1406
        %v1409 = vsel %vm1232, %v1397, 0
        %1411 = vmatprep.subr.mxu0 0.0
        %1412 = vmatpush1.msra.mxu0 0.0
        %1413 = vmatprep.subr.mxu0 0.0
        %1414 = vmatpush1.msra.mxu0 0.0
        %1415 = vmatprep.subr.mxu0 0.0
        %1416 = vmatpush1.msra.mxu0 0.0
        %1417 = vmatprep.subr.mxu0 0.0
        %1418 = vmatpush1.msra.mxu0 0.0
        %1419 = vmatprep.subr.mxu0 0.0
        %1420 = vmatpush1.msra.mxu0 0.0
        %1421 = vmatprep.subr.mxu0 0.0
        %1422 = vmatpush1.msra.mxu0 0.0
        %1423 = vmatprep.subr.mxu0 0.0
        %1424 = vmatpush1.msra.mxu0 0.0
        %1425 = vmatprep.subr.mxu0 0.0
        %1426 = vmatpush1.msra.mxu0 0.0
        %1427 = vmatprep.subr.mxu0 0.0
        %1428 = vmatpush1.msra.mxu0 0.0
        %1429 = vmatprep.subr.mxu0 0.0
        %1430 = vmatpush1.msra.mxu0 0.0
        %1431 = vmatprep.subr.mxu0 0.0
        %1432 = vmatpush1.msra.mxu0 0.0
        %1433 = vmatprep.subr.mxu0 0.0
        %1434 = vmatpush1.msra.mxu0 0.0
        %1435 = vmatprep.subr.mxu0 0.0
        %1436 = vmatpush1.msra.mxu0 0.0
        %1437 = vmatprep.subr.mxu0 0.0
        %1438 = vmatpush1.msra.mxu0 0.0
        %1439 = vmatprep.subr.mxu0 0.0
        %1440 = vmatpush1.msra.mxu0 0.0
        %1441 = vmatprep.subr.mxu0 %v914
        %1442 = vmatpush1.msra.mxu0 %v913
        %1443 = vmatprep.subr.mxu0 0.0
        %1444 = vmatpush2.msra.mxu0 0.0
        %1445 = vmatprep.subr.mxu0 0.0
        %1446 = vmatpush2.msra.mxu0 0.0
        %1447 = vmatprep.subr.mxu0 0.0
        %1448 = vmatpush2.msra.mxu0 0.0
        %1449 = vmatprep.subr.mxu0 0.0
        %1450 = vmatpush2.msra.mxu0 0.0
        %1451 = vmatprep.subr.mxu0 0.0
        %1452 = vmatpush2.msra.mxu0 0.0
        %1453 = vmatprep.subr.mxu0 0.0
        %1454 = vmatpush2.msra.mxu0 0.0
        %1455 = vmatprep.subr.mxu0 0.0
        %1456 = vmatpush2.msra.mxu0 0.0
        %1457 = vmatprep.subr.mxu0 0.0
        %1458 = vmatpush2.msra.mxu0 0.0
        %1459 = vmatprep.subr.mxu0 0.0
        %1460 = vmatpush2.msra.mxu0 0.0
        %1461 = vmatprep.subr.mxu0 0.0
        %1462 = vmatpush2.msra.mxu0 0.0
        %1463 = vmatprep.subr.mxu0 0.0
        %1464 = vmatpush2.msra.mxu0 0.0
        %1465 = vmatprep.subr.mxu0 0.0
        %1466 = vmatpush2.msra.mxu0 0.0
        %1467 = vmatprep.subr.mxu0 0.0
        %1468 = vmatpush2.msra.mxu0 0.0
        %1469 = vmatprep.subr.mxu0 0.0
        %1470 = vmatpush2.msra.mxu0 0.0
        %1471 = vmatprep.subr.mxu0 0.0
        %1472 = vmatpush2.msra.mxu0 0.0
        %1473 = vmatprep.subr.mxu0 0.0
        %1474 = vmatpush2.msra.mxu0 0.0
        %1475 = vmatprep.mubr.f32.mxu0 0.0
        %1476 = vmatmul.mubr.f32.gmra.mxu0 %v1409
        %v1477 = vpop.f32.mrf.mxu0
        %v1478 = vadd.f32 %v1407, %v1477
        %v1479 = vpop.f32.mrf.mxu0
        %v1480 = vadd.f32 %v1407, %v1479
        %1481 = vdwg.mxu0
        %1482 = vmatprep.subr.mxu0 0.0
        %1483 = vmatpush1.msra.mxu0 0.0
        %1484 = vmatprep.subr.mxu0 0.0
        %1485 = vmatpush1.msra.mxu0 0.0
        %1486 = vmatprep.subr.mxu0 0.0
        %1487 = vmatpush1.msra.mxu0 0.0
        %1488 = vmatprep.subr.mxu0 0.0
        %1489 = vmatpush1.msra.mxu0 0.0
        %1490 = vmatprep.subr.mxu0 0.0
        %1491 = vmatpush1.msra.mxu0 0.0
        %1492 = vmatprep.subr.mxu0 0.0
        %1493 = vmatpush1.msra.mxu0 0.0
        %1494 = vmatprep.subr.mxu0 0.0
        %1495 = vmatpush1.msra.mxu0 0.0
        %1496 = vmatprep.subr.mxu0 0.0
        %1497 = vmatpush1.msra.mxu0 0.0
        %1498 = vmatprep.subr.mxu0 0.0
        %1499 = vmatpush1.msra.mxu0 0.0
        %1500 = vmatprep.subr.mxu0 0.0
        %1501 = vmatpush1.msra.mxu0 0.0
        %1502 = vmatprep.subr.mxu0 0.0
        %1503 = vmatpush1.msra.mxu0 0.0
        %1504 = vmatprep.subr.mxu0 0.0
        %1505 = vmatpush1.msra.mxu0 0.0
        %1506 = vmatprep.subr.mxu0 0.0
        %1507 = vmatpush1.msra.mxu0 0.0
        %1508 = vmatprep.subr.mxu0 0.0
        %1509 = vmatpush1.msra.mxu0 0.0
        %1510 = vmatprep.subr.mxu0 0.0
        %1511 = vmatpush1.msra.mxu0 0.0
        %1512 = vmatprep.subr.mxu0 %v916
        %1513 = vmatpush1.msra.mxu0 %v915
        %1514 = vmatprep.subr.mxu0 0.0
        %1515 = vmatpush2.msra.mxu0 0.0
        %1516 = vmatprep.subr.mxu0 0.0
        %1517 = vmatpush2.msra.mxu0 0.0
        %1518 = vmatprep.subr.mxu0 0.0
        %1519 = vmatpush2.msra.mxu0 0.0
        %1520 = vmatprep.subr.mxu0 0.0
        %1521 = vmatpush2.msra.mxu0 0.0
        %1522 = vmatprep.subr.mxu0 0.0
        %1523 = vmatpush2.msra.mxu0 0.0
        %1524 = vmatprep.subr.mxu0 0.0
        %1525 = vmatpush2.msra.mxu0 0.0
        %1526 = vmatprep.subr.mxu0 0.0
        %1527 = vmatpush2.msra.mxu0 0.0
        %1528 = vmatprep.subr.mxu0 0.0
        %1529 = vmatpush2.msra.mxu0 0.0
        %1530 = vmatprep.subr.mxu0 0.0
        %1531 = vmatpush2.msra.mxu0 0.0
        %1532 = vmatprep.subr.mxu0 0.0
        %1533 = vmatpush2.msra.mxu0 0.0
        %1534 = vmatprep.subr.mxu0 0.0
        %1535 = vmatpush2.msra.mxu0 0.0
        %1536 = vmatprep.subr.mxu0 0.0
        %1537 = vmatpush2.msra.mxu0 0.0
        %1538 = vmatprep.subr.mxu0 0.0
        %1539 = vmatpush2.msra.mxu0 0.0
        %1540 = vmatprep.subr.mxu0 0.0
        %1541 = vmatpush2.msra.mxu0 0.0
        %1542 = vmatprep.subr.mxu0 0.0
        %1543 = vmatpush2.msra.mxu0 0.0
        %1544 = vmatprep.subr.mxu0 0.0
        %1545 = vmatpush2.msra.mxu0 0.0
        %1546 = vmatprep.mubr.f32.mxu0 0.0
        %1547 = vmatmul.mubr.f32.gmra.mxu0 %v1409
        %v1548 = vpop.f32.mrf.mxu0
        %v1549 = vadd.f32 %v1407, %v1548
        %v1550 = vpop.f32.mrf.mxu0
        %v1551 = vadd.f32 %v1407, %v1550
        %1552 = vdwg.mxu0
        %1553 = vmatprep.subr.mxu0 0.0
        %1554 = vmatpush1.msra.mxu0 0.0
        %1555 = vmatprep.subr.mxu0 0.0
        %1556 = vmatpush1.msra.mxu0 0.0
        %1557 = vmatprep.subr.mxu0 0.0
        %1558 = vmatpush1.msra.mxu0 0.0
        %1559 = vmatprep.subr.mxu0 0.0
        %1560 = vmatpush1.msra.mxu0 0.0
        %1561 = vmatprep.subr.mxu0 0.0
        %1562 = vmatpush1.msra.mxu0 0.0
        %1563 = vmatprep.subr.mxu0 0.0
        %1564 = vmatpush1.msra.mxu0 0.0
        %1565 = vmatprep.subr.mxu0 0.0
        %1566 = vmatpush1.msra.mxu0 0.0
        %1567 = vmatprep.subr.mxu0 0.0
        %1568 = vmatpush1.msra.mxu0 0.0
        %1569 = vmatprep.subr.mxu0 0.0
        %1570 = vmatpush1.msra.mxu0 0.0
        %1571 = vmatprep.subr.mxu0 0.0
        %1572 = vmatpush1.msra.mxu0 0.0
        %1573 = vmatprep.subr.mxu0 0.0
        %1574 = vmatpush1.msra.mxu0 0.0
        %1575 = vmatprep.subr.mxu0 0.0
        %1576 = vmatpush1.msra.mxu0 0.0
        %1577 = vmatprep.subr.mxu0 0.0
        %1578 = vmatpush1.msra.mxu0 0.0
        %1579 = vmatprep.subr.mxu0 0.0
        %1580 = vmatpush1.msra.mxu0 0.0
        %1581 = vmatprep.subr.mxu0 0.0
        %1582 = vmatpush1.msra.mxu0 0.0
        %1583 = vmatprep.subr.mxu0 %v918
        %1584 = vmatpush1.msra.mxu0 %v917
        %1585 = vmatprep.subr.mxu0 0.0
        %1586 = vmatpush2.msra.mxu0 0.0
        %1587 = vmatprep.subr.mxu0 0.0
        %1588 = vmatpush2.msra.mxu0 0.0
        %1589 = vmatprep.subr.mxu0 0.0
        %1590 = vmatpush2.msra.mxu0 0.0
        %1591 = vmatprep.subr.mxu0 0.0
        %1592 = vmatpush2.msra.mxu0 0.0
        %1593 = vmatprep.subr.mxu0 0.0
        %1594 = vmatpush2.msra.mxu0 0.0
        %1595 = vmatprep.subr.mxu0 0.0
        %1596 = vmatpush2.msra.mxu0 0.0
        %1597 = vmatprep.subr.mxu0 0.0
        %1598 = vmatpush2.msra.mxu0 0.0
        %1599 = vmatprep.subr.mxu0 0.0
        %1600 = vmatpush2.msra.mxu0 0.0
        %1601 = vmatprep.subr.mxu0 0.0
        %1602 = vmatpush2.msra.mxu0 0.0
        %1603 = vmatprep.subr.mxu0 0.0
        %1604 = vmatpush2.msra.mxu0 0.0
        %1605 = vmatprep.subr.mxu0 0.0
        %1606 = vmatpush2.msra.mxu0 0.0
        %1607 = vmatprep.subr.mxu0 0.0
        %1608 = vmatpush2.msra.mxu0 0.0
        %1609 = vmatprep.subr.mxu0 0.0
        %1610 = vmatpush2.msra.mxu0 0.0
        %1611 = vmatprep.subr.mxu0 0.0
        %1612 = vmatpush2.msra.mxu0 0.0
        %1613 = vmatprep.subr.mxu0 0.0
        %1614 = vmatpush2.msra.mxu0 0.0
        %1615 = vmatprep.subr.mxu0 0.0
        %1616 = vmatpush2.msra.mxu0 0.0
        %1617 = vmatprep.mubr.f32.mxu0 0.0
        %1618 = vmatmul.mubr.f32.gmra.mxu0 %v1409
        %v1619 = vpop.f32.mrf.mxu0
        %v1620 = vadd.f32 %v1407, %v1619
        %v1621 = vpop.f32.mrf.mxu0
        %v1622 = vadd.f32 %v1407, %v1621
        %1623 = vdwg.mxu0
        %v1624 = vxor.u32 %v1478, 2147483648
        %v1625 = vxor.u32 %v1480, 2147483648
        %v1626 = vxor.u32 %v1549, 2147483648
        %v1627 = vxor.u32 %v1551, 2147483648
        %v1628 = vxor.u32 %v1620, 2147483648
        %v1629 = vxor.u32 %v1622, 2147483648
        %v1630 = vmul.f32 %v1624, 1.442695
        %v1631 = vpow.pop %v1630
        %v1632 = vmul.f32 %v1625, 1.442695
        %v1633 = vpow.pop %v1632
        %v1634 = vmul.f32 %v1626, 1.442695
        %v1635 = vpow.pop %v1634
        %v1636 = vmul.f32 %v1627, 1.442695
        %v1637 = vpow.pop %v1636
        %v1638 = vmul.f32 %v1628, 1.442695
        %v1639 = vpow.pop %v1638
        %v1640 = vmul.f32 %v1629, 1.442695
        %v1641 = vpow.pop %v1640
        %v1642 = vadd.f32 %v1631, 1.0
        %v1643 = vadd.f32 %v1633, 1.0
        %v1644 = vadd.f32 %v1635, 1.0
        %v1645 = vadd.f32 %v1637, 1.0
        %v1646 = vadd.f32 %v1639, 1.0
        %v1647 = vadd.f32 %v1641, 1.0
        %v1648 = vrcp.pop %v1642
        %v1649 = vmul.f32 1.0, %v1648
        %v1650 = vrcp.pop %v1643
        %v1651 = vmul.f32 1.0, %v1650
        %v1652 = vrcp.pop %v1644
        %v1653 = vmul.f32 1.0, %v1652
        %v1654 = vrcp.pop %v1645
        %v1655 = vmul.f32 1.0, %v1654
        %v1656 = vrcp.pop %v1646
        %v1657 = vmul.f32 1.0, %v1656
        %v1658 = vrcp.pop %v1647
        %v1659 = vmul.f32 1.0, %v1658
        %1661 = vset.pattern.permute.xlu0 0
        %1662 = vperm.xlu0 %1661, %v1396
        %v1663 = vpop.permute.xlu0 %1662
        %v1665 = vlaneseq
        %v1666 = vshrl.u32 %v1665, 7
        %v1667 = vsub.s32 0, %v1666
        %v1668 = vrot.slane %v1649, %v1667
        %v1669 = vlaneseq
        %v1670 = vshrl.u32 %v1669, 7
        %v1671 = vsub.s32 0, %v1670
        %v1672 = vrot.slane %v1651, %v1671
        %v1673 = vlaneseq
        %v1674 = vshrl.u32 %v1673, 7
        %v1675 = vsub.s32 0, %v1674
        %v1676 = vrot.slane %v1653, %v1675
        %v1677 = vmax.f32 %v1663, %v1668
        %v1678 = vmax.f32 %v1663, %v1672
        %v1679 = vmax.f32 %v1663, %v1676
        %v1680 = vmul.f32 %v913, %v1677
        %v1681 = vmul.f32 %v914, %v1678
        %v1682 = vmul.f32 %v915, %v1679
        %1683 = vst [vmem:[%s357] sm:$0xff] %v1680
        %1684 = vst [vmem:[%s357 + $0x8] sm:$0xff] %v1681
        %1685 = vst [vmem:[%s357 + $0x10] sm:$0xff] %v1682
        %1686 = vset.pattern.permute.xlu0 1
        %1687 = vperm.xlu0 %1686, %v1396
        %v1688 = vpop.permute.xlu0 %1687
        %v1690 = vlaneseq
        %v1691 = vshrl.u32 %v1690, 7
        %v1692 = vsub.s32 0, %v1691
        %v1693 = vrot.slane %v1655, %v1692
        %v1694 = vlaneseq
        %v1695 = vshrl.u32 %v1694, 7
        %v1696 = vsub.s32 0, %v1695
        %v1697 = vrot.slane %v1657, %v1696
        %v1698 = vlaneseq
        %v1699 = vshrl.u32 %v1698, 7
        %v1700 = vsub.s32 0, %v1699
        %v1701 = vrot.slane %v1659, %v1700
        %v1702 = vmax.f32 %v1688, %v1693
        %v1703 = vmax.f32 %v1688, %v1697
        %v1704 = vmax.f32 %v1688, %v1701
        %v1705 = vmul.f32 %v916, %v1702
        %v1706 = vmul.f32 %v917, %v1703
        %v1707 = vmul.f32 %v918, %v1704
        %s1708 = scalar_lea.vmem %s357, 24 [#allocation3]
        %1709 = vst [vmem:[%s1708] sm:$0xff] %v1705
        %1710 = vst [vmem:[%s1708 + $0x8] sm:$0xff] %v1706
        %1711 = vst [vmem:[%s1708 + $0x10] sm:$0xff] %v1707
        %s1712 = sand.u32 %s249, 1
        %s1713 = scalar_lea.sflag [#allocation4], %s1712
        %s1714 = sand.u32 %s249, 1
        %s1715 = smul.addr %s1714, 48
        %s1716 = scalar_lea.vmem [#allocation3], %s1715
        // Predicated region
        $region61: #{tpu_custom_call.1} parent=59 // pred_check
          %p1717 = pneg %p259
        $region62: #{tpu_custom_call.1} parent=59 // pred_check_branch
          %1719 = sbr.rel (%p1717) target = $region64
        $region63: #{tpu_custom_call.1} parent=59 // pred_region
          %s1720 = smul.u32 2, %s26
          %s1722 = ssub.s32 768, 768
          %1723 = vsyncadd %s1713, %s1722
          %s1724 = smul.addr %s1720, 3
          %s1725 = smul.addr %s1724, 128
          %s1726 = scalar_lea.hbm %s10, %s1725
          %s1727 = sshll.u32 %s1716, 4
          %s1728 = int_to_ptr.vmem [resolvable:$true] %s1727
          %1733 = dma.vmem_to_hbm [thread:$0]  %s1728, 768, %s1726, %s1713, 384, 384, 24
        $region64: #{tpu_custom_call.1} parent=59 // pred_fallthru
          _
      $region60: #{tpu_custom_call.1} parent=5 // pred_fallthru
        _
      %p1734 = scmp.le.s32.totalorder 2, %s21
      // Predicated region
      $region65: #{tpu_custom_call.1} parent=5 // pred_check
        %p1735 = pneg %p1734
      $region66: #{tpu_custom_call.1} parent=5 // pred_check_branch
        %1737 = sbr.rel (%p1735) target = $region68
      $region67: #{tpu_custom_call.1} parent=5 // pred_region
        %s1738 = ssub.s32 %s21, 2
        // Predicated region
        $region69: #{tpu_custom_call.1} parent=67 // pred_check
          %p1739 = pneg %p265
        $region70: #{tpu_custom_call.1} parent=67 // pred_check_branch
          %1741 = sbr.rel (%p1739) target = $region72
        $region71: #{tpu_custom_call.1} parent=67 // pred_region
          %s1742 = sand.u32 %s250, 1
          %s1743 = scalar_lea.sflag [#allocation4], %s1742
          %s1744 = sand.u32 %s250, 1
          %s1745 = smul.addr %s1744, 48
          %s1746 = scalar_lea.vmem [#allocation3], %s1745
          %1747 = dma.done %s1743, 768
        $region72: #{tpu_custom_call.1} parent=67 // pred_fallthru
          _
      $region68: #{tpu_custom_call.1} parent=5 // pred_fallthru
        _
    $region6: #{tpu_custom_call.1} parent=1 // loop_footer
      %s25 = sadd.s32 1, %s21
    $region7: #{tpu_custom_call.1} parent=1 // loop_footer_branch
      %20 = sbr.rel target = $region3
    $region8: #{tpu_custom_call.1} parent=1 // loop_exit
      _
    %1748 = vsyncpa [#allocation4], 1
    %s1749 = scalar_lea.sflag [#allocation4], 1
    %1750 = vsyncpa %s1749, 1

</llo_original>
